<compile_context>
chip_gen: v6e
topology: v6e:2x2x1
jax: 0.10.0
libtpu: 0.0.40
codegen_flags: <defaults>
</compile_context>

<pallas_src>
import functools

import jax
import jax.numpy as jnp
from jax import lax
from jax.experimental import pallas as pl
from jax.experimental.pallas import tpu as pltpu

EPS = 1e-5
NUM_ATT = 4


# ------------------------------ fused kernel --------------------------------

def _fused_generator_kernel(
    x_ref,
    fc1_w_ref, fc1_b_ref, bn1_g_ref, bn1_b_ref,
    fc2_w_ref, fc2_b_ref, bn2_g_ref, bn2_b_ref,
    fc3_w_ref, fc3_b_ref,
    att_gtp_w_ref, att_gtp_b_ref, att_W_w_ref, att_W_b_ref,
    att_bn_g_ref, att_bn_b_ref,
    fc4_w_ref, fc4_b_ref, bn4_g_ref, bn4_b_ref,
    fc5_w_ref, fc5_b_ref,
    head_w_ref, head_b_ref,
    o_ref,
    *, skip_zero_attn_bn=False,
):
    x = x_ref[...]                                   # (B, E, F) float32
    B, E, _ = x.shape

    def linear(h, w_ref, b_ref):
        # (B, E, Fin) -> (B, E, Fout) via ONE 2-D MXU dot with M = B*E.
        w = w_ref[...]
        y = jnp.dot(h.reshape(B * E, h.shape[-1]), w,
                    preferred_element_type=jnp.float32) + b_ref[...]
        return y.reshape(B, E, w.shape[-1])

    def bn_train(y, g, b):
        # BatchNorm1d(num_elements) in training mode on (B, E, L):
        # per-channel (E) statistics over (batch, length), biased variance.
        mean = jnp.mean(y, axis=(0, 2), keepdims=True)
        var = jnp.mean((y - mean) ** 2, axis=(0, 2), keepdims=True)
        return (y - mean) * lax.rsqrt(var + EPS) * g[None] + b[None]

    # ------------------------------ encoder ---------------------------------
    h = jnp.maximum(bn_train(linear(x, fc1_w_ref, fc1_b_ref),
                             bn1_g_ref[...], bn1_b_ref[...]), 0.0)
    h = jnp.maximum(bn_train(linear(h, fc2_w_ref, fc2_b_ref),
                             bn2_g_ref[...], bn2_b_ref[...]), 0.0)
    h = jax.nn.sigmoid(linear(h, fc3_w_ref, fc3_b_ref))

    # -------------------- 4 x Attention(num_elements, 1) --------------------
    if skip_zero_attn_bn:
        # W[1] BatchNorm has gamma = beta = 0 (nn.init.constant), so the whole
        # W-branch is identically zero and each block is a residual identity.
        pass
    else:
        gtp_w = att_gtp_w_ref[...]    # (4, E, 3): stacked [g | theta | phi] weights
        gtp_b = att_gtp_b_ref[...]    # (4, 3, 1)
        W_w = att_W_w_ref[...]        # (4, E, 1): Conv1d(1 -> E) weight
        W_b = att_W_b_ref[...]        # (4, E, 1)
        bn_g = att_bn_g_ref[...]      # (4, E, 1)  (zeros at init)
        bn_b = att_bn_b_ref[...]      # (4, E, 1)  (zeros at init)

        L = h.shape[-1]
        inv_L = jnp.float32(1.0 / L)
        for i in range(NUM_ATT):      # unrolled at trace time
            # Fused g/theta/phi 1x1 convs: one broadcast-multiply, one reduce
            # over the channel axis E (a major dim -> plain VPU adds).
            proj = jnp.sum(h[:, :, None, :] * gtp_w[i][None, :, :, None],
                           axis=1) + gtp_b[i][None]            # (B, 3, L)
            g2 = proj[:, 0, :]                                  # (B, L)
            t2 = proj[:, 1, :]
            p2 = proj[:, 2, :]
            # f = theta (x) phi is rank-1  =>  y = (f / N) @ g collapses to
            #   y = theta * (phi . g) / L      (no (B, L, L) temporary).
            s = jnp.sum(p2 * g2, axis=-1, keepdims=True)        # (B, 1)
            y = t2 * (s * inv_L)                                # (B, L)
            # W: 1x1 Conv1d (1 -> E), BatchNorm1d(E), residual add.
            wy = y[:, None, :] * W_w[i][None] + W_b[i][None]    # (B, E, L)
            wy = bn_train(wy, bn_g[i], bn_b[i])
            h = wy + h

    # --------------------------- decoder + heads ----------------------------
    h = jnp.maximum(bn_train(linear(h, fc4_w_ref, fc4_b_ref),
                             bn4_g_ref[...], bn4_b_ref[...]), 0.0)
    h = jnp.maximum(linear(h, fc5_w_ref, fc5_b_ref), 0.0)
    # fc6 (cls) and fc7 (geo) fused along the output axis: sigmoid is
    # elementwise, so cat(sigmoid(cls), sigmoid(geo)) == sigmoid(x @ [W6|W7] + [b6|b7]).
    o_ref[...] = jax.nn.sigmoid(linear(h, head_w_ref, head_b_ref))


# ------------------------------ pallas wrapper -------------------------------

def generator_forward(params, x, *, skip_zero_attn_bn=False):
    p = params
    B, E, _ = x.shape
    args = (
        x,
        p["fc1_w"], p["fc1_b"], p["bn1_g"], p["bn1_b"],
        p["fc2_w"], p["fc2_b"], p["bn2_g"], p["bn2_b"],
        p["fc3_w"], p["fc3_b"],
        p["att_gtp_w"], p["att_gtp_b"], p["att_W_w"], p["att_W_b"],
        p["att_bn_g"], p["att_bn_b"],
        p["fc4_w"], p["fc4_b"], p["bn4_g"], p["bn4_b"],
        p["fc5_w"], p["fc5_b"],
        p["head_w"], p["head_b"],
    )
    vmem = lambda: pl.BlockSpec(memory_space=pltpu.MemorySpace.VMEM)
    kernel = functools.partial(_fused_generator_kernel,
                               skip_zero_attn_bn=skip_zero_attn_bn)
    out = pl.pallas_call(
        kernel,
        out_shape=jax.ShapeDtypeStruct((B, E, p["head_w"].shape[1]), jnp.float32),
        in_specs=[vmem() for _ in args],
        out_specs=vmem(),
    )(*args)
    return out


# ------------------------------- parameters ----------------------------------

def make_params(key, num_elements, geo_num, cls_num):
    F = geo_num + cls_num
    E = num_elements
    ks = iter(jax.random.split(key, 64))

    def w(shape, scale=0.1):
        return scale * jax.random.normal(next(ks), shape, jnp.float32)

    return dict(
        # Linear weights stored pre-transposed as (in_features, out_features).
        fc1_w=w((F, 2 * F)), fc1_b=w((1, 2 * F)),
        bn1_g=jnp.ones((E, 1), jnp.float32), bn1_b=jnp.zeros((E, 1), jnp.float32),
        fc2_w=w((2 * F, 4 * F)), fc2_b=w((1, 4 * F)),
        bn2_g=jnp.ones((E, 1), jnp.float32), bn2_b=jnp.zeros((E, 1), jnp.float32),
        fc3_w=w((4 * F, 4 * F)), fc3_b=w((1, 4 * F)),
        fc4_w=w((4 * F, 2 * F)), fc4_b=w((1, 2 * F)),
        bn4_g=jnp.ones((E, 1), jnp.float32), bn4_b=jnp.zeros((E, 1), jnp.float32),
        fc5_w=w((2 * F, F)), fc5_b=w((1, F)),
        # fc6 (cls head) and fc7 (geo head) fused along the output axis.
        head_w=jnp.concatenate([w((F, cls_num)), w((F, geo_num))], axis=1),
        head_b=jnp.concatenate([w((1, cls_num)), w((1, geo_num))], axis=1),
        # Attention params, stacked over the 4 blocks.
        # att_gtp_w[i, :, t] = Conv1d(E, 1, k=1) weight for t in {g, theta, phi}.
        att_gtp_w=w((NUM_ATT, E, 3)),
        att_gtp_b=w((NUM_ATT, 3, 1)),
        att_W_w=w((NUM_ATT, E, 1)),            # Conv1d(1, E, k=1) weight
        att_W_b=w((NUM_ATT, E, 1)),
        att_bn_g=jnp.zeros((NUM_ATT, E, 1), jnp.float32),  # nn.init.constant(W[1].weight, 0)
        att_bn_b=jnp.zeros((NUM_ATT, E, 1), jnp.float32),  # nn.init.constant(W[1].bias, 0)
    )


# ---------------------------- pure-JAX reference ------------------------------

def _ref_bn(y, g, b):
    mean = y.mean(axis=(0, 2), keepdims=True)
    var = ((y - mean) ** 2).mean(axis=(0, 2), keepdims=True)
    return (y - mean) / jnp.sqrt(var + EPS) * g[None] + b[None]


def reference_forward(p, x):
    h = jax.nn.relu(_ref_bn(jnp.einsum("bef,fo->beo", x, p["fc1_w"]) + p["fc1_b"],
                            p["bn1_g"], p["bn1_b"]))
    h = jax.nn.relu(_ref_bn(jnp.einsum("bef,fo->beo", h, p["fc2_w"]) + p["fc2_b"],
                            p["bn2_g"], p["bn2_b"]))
    h = jax.nn.sigmoid(jnp.einsum("bef,fo->beo", h, p["fc3_w"]) + p["fc3_b"])
    L = h.shape[-1]
    for i in range(NUM_ATT):
        g_w = p["att_gtp_w"][i, :, 0:1]
        th_w = p["att_gtp_w"][i, :, 1:2]
        ph_w = p["att_gtp_w"][i, :, 2:3]
        g_b = p["att_gtp_b"][i, 0]
        th_b = p["att_gtp_b"][i, 1]
        ph_b = p["att_gtp_b"][i, 2]
        g2 = (h * g_w[None]).sum(1) + g_b
        t2 = (h * th_w[None]).sum(1) + th_b
        p2 = (h * ph_w[None]).sum(1) + ph_b
        # Explicit (B, L, L) form, exactly like torch.matmul in the reference.
        f = t2[:, :, None] * p2[:, None, :] / L
        y = (f * g2[:, None, :]).sum(2)
        wy = y[:, None, :] * p["att_W_w"][i][None] + p["att_W_b"][i][None]
        h = _ref_bn(wy, p["att_bn_g"][i], p["att_bn_b"][i]) + h
    h = jax.nn.relu(_ref_bn(jnp.einsum("bef,fo->beo", h, p["fc4_w"]) + p["fc4_b"],
                            p["bn4_g"], p["bn4_b"]))
    h = jax.nn.relu(jnp.einsum("bef,fo->beo", h, p["fc5_w"]) + p["fc5_b"])
    return jax.nn.sigmoid(jnp.einsum("bef,fo->beo", h, p["head_w"]) + p["head_b"])


# ------------------------------------ main ------------------------------------

if __name__ == "__main__":
    B, E, GEO, CLS = 2, 8, 3, 5          # batch, num_elements, geo_num, cls_num
    F = GEO + CLS

    key = jax.random.PRNGKey(0)
    pkey, xkey = jax.random.split(key)
    params = make_params(pkey, E, GEO, CLS)
    x = jax.random.normal(xkey, (B, E, F), jnp.float32)

    fwd = jax.jit(generator_forward)
    out = jax.block_until_ready(fwd(params, x))

    ref = reference_forward(params, x)
    assert out.shape == (B, E, F), out.shape
    assert bool(jnp.all(jnp.isfinite(out)))
    max_err = float(jnp.max(jnp.abs(out - ref)))
    assert max_err < 5e-2, f"max abs error vs reference: {max_err}"

    print("KERNEL_OK")
</pallas_src>

<mosaic_0001>
module attributes {stable_mosaic.version = 11 : i64} {
  func.func @_fused_generator_kernel(%arg0: memref<2x8x8xf32, #tpu.memory_space<vmem>>, %arg1: memref<8x16xf32, #tpu.memory_space<vmem>>, %arg2: memref<1x16xf32, #tpu.memory_space<vmem>>, %arg3: memref<8x1xf32, #tpu.memory_space<vmem>>, %arg4: memref<8x1xf32, #tpu.memory_space<vmem>>, %arg5: memref<16x32xf32, #tpu.memory_space<vmem>>, %arg6: memref<1x32xf32, #tpu.memory_space<vmem>>, %arg7: memref<8x1xf32, #tpu.memory_space<vmem>>, %arg8: memref<8x1xf32, #tpu.memory_space<vmem>>, %arg9: memref<32x32xf32, #tpu.memory_space<vmem>>, %arg10: memref<1x32xf32, #tpu.memory_space<vmem>>, %arg11: memref<4x8x3xf32, #tpu.memory_space<vmem>>, %arg12: memref<4x3x1xf32, #tpu.memory_space<vmem>>, %arg13: memref<4x8x1xf32, #tpu.memory_space<vmem>>, %arg14: memref<4x8x1xf32, #tpu.memory_space<vmem>>, %arg15: memref<4x8x1xf32, #tpu.memory_space<vmem>>, %arg16: memref<4x8x1xf32, #tpu.memory_space<vmem>>, %arg17: memref<32x16xf32, #tpu.memory_space<vmem>>, %arg18: memref<1x16xf32, #tpu.memory_space<vmem>>, %arg19: memref<8x1xf32, #tpu.memory_space<vmem>>, %arg20: memref<8x1xf32, #tpu.memory_space<vmem>>, %arg21: memref<16x8xf32, #tpu.memory_space<vmem>>, %arg22: memref<1x8xf32, #tpu.memory_space<vmem>>, %arg23: memref<8x8xf32, #tpu.memory_space<vmem>>, %arg24: memref<1x8xf32, #tpu.memory_space<vmem>>, %arg25: memref<2x8x8xf32, #tpu.memory_space<vmem>>) attributes {dimension_semantics = [], scalar_prefetch = 0 : i64, scratch_operands = 0 : i64, tpu.core_type = #tpu.core_type<tc>} {
    %c0 = arith.constant 0 : index
    %c0_0 = arith.constant 0 : index
    %c0_1 = arith.constant 0 : index
    %0 = vector.load %arg0[%c0, %c0_0, %c0_1] : memref<2x8x8xf32, #tpu.memory_space<vmem>>, vector<2x8x8xf32>
    %c0_2 = arith.constant 0 : index
    %c0_3 = arith.constant 0 : index
    %1 = vector.load %arg1[%c0_2, %c0_3] : memref<8x16xf32, #tpu.memory_space<vmem>>, vector<8x16xf32>
    %2 = vector.shape_cast %0 : vector<2x8x8xf32> to vector<16x8xf32>
    %cst = arith.constant dense<0.000000e+00> : vector<16x16xf32>
    %3 = tpu.matmul %2, %1, %cst {dimension_numbers = #tpu.dot_dimension_numbers<[1], [0], [0], [1], [0, 0, 1, 1], [], []>} : vector<16x8xf32>, vector<8x16xf32>, vector<16x16xf32> -> vector<16x16xf32>
    %c0_4 = arith.constant 0 : index
    %c0_5 = arith.constant 0 : index
    %4 = vector.load %arg2[%c0_4, %c0_5] : memref<1x16xf32, #tpu.memory_space<vmem>>, vector<1x16xf32>
    %5 = vector.broadcast %4 : vector<1x16xf32> to vector<16x16xf32>
    %6 = arith.addf %3, %5 : vector<16x16xf32>
    %7 = vector.shape_cast %6 : vector<16x16xf32> to vector<2x8x16xf32>
    %c0_6 = arith.constant 0 : index
    %c0_7 = arith.constant 0 : index
    %8 = vector.load %arg3[%c0_6, %c0_7] : memref<8x1xf32, #tpu.memory_space<vmem>>, vector<8x1xf32>
    %c0_8 = arith.constant 0 : index
    %c0_9 = arith.constant 0 : index
    %9 = vector.load %arg4[%c0_8, %c0_9] : memref<8x1xf32, #tpu.memory_space<vmem>>, vector<8x1xf32>
    %cst_10 = arith.constant dense<0.000000e+00> : vector<8xf32>
    %10 = vector.multi_reduction <add>, %7, %cst_10 [0, 2] : vector<2x8x16xf32> to vector<8xf32>
    %11 = vector.shape_cast %10 : vector<8xf32> to vector<1x8x1xf32>
    %cst_11 = arith.constant 3.200000e+01 : f32
    %12 = vector.broadcast %cst_11 : f32 to vector<1x8x1xf32>
    %13 = arith.divf %11, %12 : vector<1x8x1xf32>
    %14 = vector.broadcast %13 : vector<1x8x1xf32> to vector<2x8x16xf32>
    %15 = arith.subf %7, %14 : vector<2x8x16xf32>
    %16 = arith.mulf %15, %15 : vector<2x8x16xf32>
    %cst_12 = arith.constant dense<0.000000e+00> : vector<8xf32>
    %17 = vector.multi_reduction <add>, %16, %cst_12 [0, 2] : vector<2x8x16xf32> to vector<8xf32>
    %18 = vector.shape_cast %17 : vector<8xf32> to vector<1x8x1xf32>
    %cst_13 = arith.constant 3.200000e+01 : f32
    %19 = vector.broadcast %cst_13 : f32 to vector<1x8x1xf32>
    %20 = arith.divf %18, %19 : vector<1x8x1xf32>
    %21 = vector.broadcast %13 : vector<1x8x1xf32> to vector<2x8x16xf32>
    %22 = arith.subf %7, %21 : vector<2x8x16xf32>
    %cst_14 = arith.constant 9.99999974E-6 : f32
    %23 = vector.broadcast %cst_14 : f32 to vector<1x8x1xf32>
    %24 = arith.addf %20, %23 : vector<1x8x1xf32>
    %25 = math.rsqrt %24 : vector<1x8x1xf32>
    %26 = vector.broadcast %25 : vector<1x8x1xf32> to vector<2x8x16xf32>
    %27 = arith.mulf %22, %26 : vector<2x8x16xf32>
    %28 = vector.shape_cast %8 : vector<8x1xf32> to vector<1x8x1xf32>
    %29 = vector.broadcast %28 : vector<1x8x1xf32> to vector<2x8x16xf32>
    %30 = arith.mulf %27, %29 : vector<2x8x16xf32>
    %31 = vector.shape_cast %9 : vector<8x1xf32> to vector<1x8x1xf32>
    %32 = vector.broadcast %31 : vector<1x8x1xf32> to vector<2x8x16xf32>
    %33 = arith.addf %30, %32 : vector<2x8x16xf32>
    %cst_15 = arith.constant 0.000000e+00 : f32
    %34 = vector.broadcast %cst_15 : f32 to vector<2x8x16xf32>
    %35 = arith.maximumf %33, %34 : vector<2x8x16xf32>
    %c0_16 = arith.constant 0 : index
    %c0_17 = arith.constant 0 : index
    %36 = vector.load %arg5[%c0_16, %c0_17] : memref<16x32xf32, #tpu.memory_space<vmem>>, vector<16x32xf32>
    %37 = vector.shape_cast %35 : vector<2x8x16xf32> to vector<16x16xf32>
    %cst_18 = arith.constant dense<0.000000e+00> : vector<16x32xf32>
    %38 = tpu.matmul %37, %36, %cst_18 {dimension_numbers = #tpu.dot_dimension_numbers<[1], [0], [0], [1], [0, 0, 1, 1], [], []>} : vector<16x16xf32>, vector<16x32xf32>, vector<16x32xf32> -> vector<16x32xf32>
    %c0_19 = arith.constant 0 : index
    %c0_20 = arith.constant 0 : index
    %39 = vector.load %arg6[%c0_19, %c0_20] : memref<1x32xf32, #tpu.memory_space<vmem>>, vector<1x32xf32>
    %40 = vector.broadcast %39 : vector<1x32xf32> to vector<16x32xf32>
    %41 = arith.addf %38, %40 : vector<16x32xf32>
    %42 = vector.shape_cast %41 : vector<16x32xf32> to vector<2x8x32xf32>
    %c0_21 = arith.constant 0 : index
    %c0_22 = arith.constant 0 : index
    %43 = vector.load %arg7[%c0_21, %c0_22] : memref<8x1xf32, #tpu.memory_space<vmem>>, vector<8x1xf32>
    %c0_23 = arith.constant 0 : index
    %c0_24 = arith.constant 0 : index
    %44 = vector.load %arg8[%c0_23, %c0_24] : memref<8x1xf32, #tpu.memory_space<vmem>>, vector<8x1xf32>
    %cst_25 = arith.constant dense<0.000000e+00> : vector<8xf32>
    %45 = vector.multi_reduction <add>, %42, %cst_25 [0, 2] : vector<2x8x32xf32> to vector<8xf32>
    %46 = vector.shape_cast %45 : vector<8xf32> to vector<1x8x1xf32>
    %cst_26 = arith.constant 6.400000e+01 : f32
    %47 = vector.broadcast %cst_26 : f32 to vector<1x8x1xf32>
    %48 = arith.divf %46, %47 : vector<1x8x1xf32>
    %49 = vector.broadcast %48 : vector<1x8x1xf32> to vector<2x8x32xf32>
    %50 = arith.subf %42, %49 : vector<2x8x32xf32>
    %51 = arith.mulf %50, %50 : vector<2x8x32xf32>
    %cst_27 = arith.constant dense<0.000000e+00> : vector<8xf32>
    %52 = vector.multi_reduction <add>, %51, %cst_27 [0, 2] : vector<2x8x32xf32> to vector<8xf32>
    %53 = vector.shape_cast %52 : vector<8xf32> to vector<1x8x1xf32>
    %cst_28 = arith.constant 6.400000e+01 : f32
    %54 = vector.broadcast %cst_28 : f32 to vector<1x8x1xf32>
    %55 = arith.divf %53, %54 : vector<1x8x1xf32>
    %56 = vector.broadcast %48 : vector<1x8x1xf32> to vector<2x8x32xf32>
    %57 = arith.subf %42, %56 : vector<2x8x32xf32>
    %cst_29 = arith.constant 9.99999974E-6 : f32
    %58 = vector.broadcast %cst_29 : f32 to vector<1x8x1xf32>
    %59 = arith.addf %55, %58 : vector<1x8x1xf32>
    %60 = math.rsqrt %59 : vector<1x8x1xf32>
    %61 = vector.broadcast %60 : vector<1x8x1xf32> to vector<2x8x32xf32>
    %62 = arith.mulf %57, %61 : vector<2x8x32xf32>
    %63 = vector.shape_cast %43 : vector<8x1xf32> to vector<1x8x1xf32>
    %64 = vector.broadcast %63 : vector<1x8x1xf32> to vector<2x8x32xf32>
    %65 = arith.mulf %62, %64 : vector<2x8x32xf32>
    %66 = vector.shape_cast %44 : vector<8x1xf32> to vector<1x8x1xf32>
    %67 = vector.broadcast %66 : vector<1x8x1xf32> to vector<2x8x32xf32>
    %68 = arith.addf %65, %67 : vector<2x8x32xf32>
    %cst_30 = arith.constant 0.000000e+00 : f32
    %69 = vector.broadcast %cst_30 : f32 to vector<2x8x32xf32>
    %70 = arith.maximumf %68, %69 : vector<2x8x32xf32>
    %c0_31 = arith.constant 0 : index
    %c0_32 = arith.constant 0 : index
    %71 = vector.load %arg9[%c0_31, %c0_32] : memref<32x32xf32, #tpu.memory_space<vmem>>, vector<32x32xf32>
    %72 = vector.shape_cast %70 : vector<2x8x32xf32> to vector<16x32xf32>
    %cst_33 = arith.constant dense<0.000000e+00> : vector<16x32xf32>
    %73 = tpu.matmul %72, %71, %cst_33 {dimension_numbers = #tpu.dot_dimension_numbers<[1], [0], [0], [1], [0, 0, 1, 1], [], []>} : vector<16x32xf32>, vector<32x32xf32>, vector<16x32xf32> -> vector<16x32xf32>
    %c0_34 = arith.constant 0 : index
    %c0_35 = arith.constant 0 : index
    %74 = vector.load %arg10[%c0_34, %c0_35] : memref<1x32xf32, #tpu.memory_space<vmem>>, vector<1x32xf32>
    %75 = vector.broadcast %74 : vector<1x32xf32> to vector<16x32xf32>
    %76 = arith.addf %73, %75 : vector<16x32xf32>
    %77 = vector.shape_cast %76 : vector<16x32xf32> to vector<2x8x32xf32>
    %78 = arith.negf %77 : vector<2x8x32xf32>
    %79 = math.exp %78 : vector<2x8x32xf32>
    %cst_36 = arith.constant 1.000000e+00 : f32
    %80 = vector.broadcast %cst_36 : f32 to vector<2x8x32xf32>
    %81 = arith.addf %80, %79 : vector<2x8x32xf32>
    %82 = arith.divf %80, %81 : vector<2x8x32xf32>
    %c0_37 = arith.constant 0 : index
    %c0_38 = arith.constant 0 : index
    %c0_39 = arith.constant 0 : index
    %83 = vector.load %arg11[%c0_37, %c0_38, %c0_39] : memref<4x8x3xf32, #tpu.memory_space<vmem>>, vector<4x8x3xf32>
    %c0_40 = arith.constant 0 : index
    %c0_41 = arith.constant 0 : index
    %c0_42 = arith.constant 0 : index
    %84 = vector.load %arg12[%c0_40, %c0_41, %c0_42] : memref<4x3x1xf32, #tpu.memory_space<vmem>>, vector<4x3x1xf32>
    %c0_43 = arith.constant 0 : index
    %c0_44 = arith.constant 0 : index
    %c0_45 = arith.constant 0 : index
    %85 = vector.load %arg13[%c0_43, %c0_44, %c0_45] : memref<4x8x1xf32, #tpu.memory_space<vmem>>, vector<4x8x1xf32>
    %c0_46 = arith.constant 0 : index
    %c0_47 = arith.constant 0 : index
    %c0_48 = arith.constant 0 : index
    %86 = vector.load %arg14[%c0_46, %c0_47, %c0_48] : memref<4x8x1xf32, #tpu.memory_space<vmem>>, vector<4x8x1xf32>
    %c0_49 = arith.constant 0 : index
    %c0_50 = arith.constant 0 : index
    %c0_51 = arith.constant 0 : index
    %87 = vector.load %arg15[%c0_49, %c0_50, %c0_51] : memref<4x8x1xf32, #tpu.memory_space<vmem>>, vector<4x8x1xf32>
    %c0_52 = arith.constant 0 : index
    %c0_53 = arith.constant 0 : index
    %c0_54 = arith.constant 0 : index
    %88 = vector.load %arg16[%c0_52, %c0_53, %c0_54] : memref<4x8x1xf32, #tpu.memory_space<vmem>>, vector<4x8x1xf32>
    %89 = vector.shape_cast %82 : vector<2x8x32xf32> to vector<2x8x1x32xf32>
    %90 = vector.extract_strided_slice %83 {offsets = [0, 0, 0], sizes = [1, 8, 3], strides = [1, 1, 1]} : vector<4x8x3xf32> to vector<1x8x3xf32>
    %91 = vector.shape_cast %90 : vector<1x8x3xf32> to vector<8x3xf32>
    %92 = vector.shape_cast %91 : vector<8x3xf32> to vector<1x8x3x1xf32>
    %93 = vector.broadcast %89 : vector<2x8x1x32xf32> to vector<2x8x3x32xf32>
    %94 = vector.broadcast %92 : vector<1x8x3x1xf32> to vector<2x8x3x32xf32>
    %95 = arith.mulf %93, %94 : vector<2x8x3x32xf32>
    %cst_55 = arith.constant dense<0.000000e+00> : vector<2x3x32xf32>
    %96 = vector.multi_reduction <add>, %95, %cst_55 [1] : vector<2x8x3x32xf32> to vector<2x3x32xf32>
    %97 = vector.extract_strided_slice %84 {offsets = [0, 0, 0], sizes = [1, 3, 1], strides = [1, 1, 1]} : vector<4x3x1xf32> to vector<1x3x1xf32>
    %98 = vector.shape_cast %97 : vector<1x3x1xf32> to vector<3x1xf32>
    %99 = vector.shape_cast %98 : vector<3x1xf32> to vector<1x3x1xf32>
    %100 = vector.broadcast %99 : vector<1x3x1xf32> to vector<2x3x32xf32>
    %101 = arith.addf %96, %100 : vector<2x3x32xf32>
    %102 = vector.extract_strided_slice %101 {offsets = [0, 0, 0], sizes = [2, 1, 32], strides = [1, 1, 1]} : vector<2x3x32xf32> to vector<2x1x32xf32>
    %103 = vector.shape_cast %102 : vector<2x1x32xf32> to vector<2x32xf32>
    %104 = vector.extract_strided_slice %101 {offsets = [0, 1, 0], sizes = [2, 1, 32], strides = [1, 1, 1]} : vector<2x3x32xf32> to vector<2x1x32xf32>
    %105 = vector.shape_cast %104 : vector<2x1x32xf32> to vector<2x32xf32>
    %106 = vector.extract_strided_slice %101 {offsets = [0, 2, 0], sizes = [2, 1, 32], strides = [1, 1, 1]} : vector<2x3x32xf32> to vector<2x1x32xf32>
    %107 = vector.shape_cast %106 : vector<2x1x32xf32> to vector<2x32xf32>
    %108 = arith.mulf %107, %103 : vector<2x32xf32>
    %cst_56 = arith.constant dense<0.000000e+00> : vector<2xf32>
    %109 = vector.multi_reduction <add>, %108, %cst_56 [1] : vector<2x32xf32> to vector<2xf32>
    %110 = vector.shape_cast %109 : vector<2xf32> to vector<2x1xf32>
    %cst_57 = arith.constant 3.125000e-02 : f32
    %111 = vector.broadcast %cst_57 : f32 to vector<2x1xf32>
    %112 = arith.mulf %110, %111 : vector<2x1xf32>
    %113 = vector.broadcast %112 : vector<2x1xf32> to vector<2x32xf32>
    %114 = arith.mulf %105, %113 : vector<2x32xf32>
    %115 = vector.shape_cast %114 : vector<2x32xf32> to vector<2x1x32xf32>
    %116 = vector.extract_strided_slice %85 {offsets = [0, 0, 0], sizes = [1, 8, 1], strides = [1, 1, 1]} : vector<4x8x1xf32> to vector<1x8x1xf32>
    %117 = vector.shape_cast %116 : vector<1x8x1xf32> to vector<8x1xf32>
    %118 = vector.shape_cast %117 : vector<8x1xf32> to vector<1x8x1xf32>
    %119 = vector.broadcast %115 : vector<2x1x32xf32> to vector<2x8x32xf32>
    %120 = vector.broadcast %118 : vector<1x8x1xf32> to vector<2x8x32xf32>
    %121 = arith.mulf %119, %120 : vector<2x8x32xf32>
    %122 = vector.extract_strided_slice %86 {offsets = [0, 0, 0], sizes = [1, 8, 1], strides = [1, 1, 1]} : vector<4x8x1xf32> to vector<1x8x1xf32>
    %123 = vector.shape_cast %122 : vector<1x8x1xf32> to vector<8x1xf32>
    %124 = vector.shape_cast %123 : vector<8x1xf32> to vector<1x8x1xf32>
    %125 = vector.broadcast %124 : vector<1x8x1xf32> to vector<2x8x32xf32>
    %126 = arith.addf %121, %125 : vector<2x8x32xf32>
    %127 = vector.extract_strided_slice %87 {offsets = [0, 0, 0], sizes = [1, 8, 1], strides = [1, 1, 1]} : vector<4x8x1xf32> to vector<1x8x1xf32>
    %128 = vector.shape_cast %127 : vector<1x8x1xf32> to vector<8x1xf32>
    %129 = vector.extract_strided_slice %88 {offsets = [0, 0, 0], sizes = [1, 8, 1], strides = [1, 1, 1]} : vector<4x8x1xf32> to vector<1x8x1xf32>
    %130 = vector.shape_cast %129 : vector<1x8x1xf32> to vector<8x1xf32>
    %cst_58 = arith.constant dense<0.000000e+00> : vector<8xf32>
    %131 = vector.multi_reduction <add>, %126, %cst_58 [0, 2] : vector<2x8x32xf32> to vector<8xf32>
    %132 = vector.shape_cast %131 : vector<8xf32> to vector<1x8x1xf32>
    %cst_59 = arith.constant 6.400000e+01 : f32
    %133 = vector.broadcast %cst_59 : f32 to vector<1x8x1xf32>
    %134 = arith.divf %132, %133 : vector<1x8x1xf32>
    %135 = vector.broadcast %134 : vector<1x8x1xf32> to vector<2x8x32xf32>
    %136 = arith.subf %126, %135 : vector<2x8x32xf32>
    %137 = arith.mulf %136, %136 : vector<2x8x32xf32>
    %cst_60 = arith.constant dense<0.000000e+00> : vector<8xf32>
    %138 = vector.multi_reduction <add>, %137, %cst_60 [0, 2] : vector<2x8x32xf32> to vector<8xf32>
    %139 = vector.shape_cast %138 : vector<8xf32> to vector<1x8x1xf32>
    %cst_61 = arith.constant 6.400000e+01 : f32
    %140 = vector.broadcast %cst_61 : f32 to vector<1x8x1xf32>
    %141 = arith.divf %139, %140 : vector<1x8x1xf32>
    %142 = vector.broadcast %134 : vector<1x8x1xf32> to vector<2x8x32xf32>
    %143 = arith.subf %126, %142 : vector<2x8x32xf32>
    %cst_62 = arith.constant 9.99999974E-6 : f32
    %144 = vector.broadcast %cst_62 : f32 to vector<1x8x1xf32>
    %145 = arith.addf %141, %144 : vector<1x8x1xf32>
    %146 = math.rsqrt %145 : vector<1x8x1xf32>
    %147 = vector.broadcast %146 : vector<1x8x1xf32> to vector<2x8x32xf32>
    %148 = arith.mulf %143, %147 : vector<2x8x32xf32>
    %149 = vector.shape_cast %128 : vector<8x1xf32> to vector<1x8x1xf32>
    %150 = vector.broadcast %149 : vector<1x8x1xf32> to vector<2x8x32xf32>
    %151 = arith.mulf %148, %150 : vector<2x8x32xf32>
    %152 = vector.shape_cast %130 : vector<8x1xf32> to vector<1x8x1xf32>
    %153 = vector.broadcast %152 : vector<1x8x1xf32> to vector<2x8x32xf32>
    %154 = arith.addf %151, %153 : vector<2x8x32xf32>
    %155 = arith.addf %154, %82 : vector<2x8x32xf32>
    %156 = vector.shape_cast %155 : vector<2x8x32xf32> to vector<2x8x1x32xf32>
    %157 = vector.extract_strided_slice %83 {offsets = [1, 0, 0], sizes = [1, 8, 3], strides = [1, 1, 1]} : vector<4x8x3xf32> to vector<1x8x3xf32>
    %158 = vector.shape_cast %157 : vector<1x8x3xf32> to vector<8x3xf32>
    %159 = vector.shape_cast %158 : vector<8x3xf32> to vector<1x8x3x1xf32>
    %160 = vector.broadcast %156 : vector<2x8x1x32xf32> to vector<2x8x3x32xf32>
    %161 = vector.broadcast %159 : vector<1x8x3x1xf32> to vector<2x8x3x32xf32>
    %162 = arith.mulf %160, %161 : vector<2x8x3x32xf32>
    %cst_63 = arith.constant dense<0.000000e+00> : vector<2x3x32xf32>
    %163 = vector.multi_reduction <add>, %162, %cst_63 [1] : vector<2x8x3x32xf32> to vector<2x3x32xf32>
    %164 = vector.extract_strided_slice %84 {offsets = [1, 0, 0], sizes = [1, 3, 1], strides = [1, 1, 1]} : vector<4x3x1xf32> to vector<1x3x1xf32>
    %165 = vector.shape_cast %164 : vector<1x3x1xf32> to vector<3x1xf32>
    %166 = vector.shape_cast %165 : vector<3x1xf32> to vector<1x3x1xf32>
    %167 = vector.broadcast %166 : vector<1x3x1xf32> to vector<2x3x32xf32>
    %168 = arith.addf %163, %167 : vector<2x3x32xf32>
    %169 = vector.extract_strided_slice %168 {offsets = [0, 0, 0], sizes = [2, 1, 32], strides = [1, 1, 1]} : vector<2x3x32xf32> to vector<2x1x32xf32>
    %170 = vector.shape_cast %169 : vector<2x1x32xf32> to vector<2x32xf32>
    %171 = vector.extract_strided_slice %168 {offsets = [0, 1, 0], sizes = [2, 1, 32], strides = [1, 1, 1]} : vector<2x3x32xf32> to vector<2x1x32xf32>
    %172 = vector.shape_cast %171 : vector<2x1x32xf32> to vector<2x32xf32>
    %173 = vector.extract_strided_slice %168 {offsets = [0, 2, 0], sizes = [2, 1, 32], strides = [1, 1, 1]} : vector<2x3x32xf32> to vector<2x1x32xf32>
    %174 = vector.shape_cast %173 : vector<2x1x32xf32> to vector<2x32xf32>
    %175 = arith.mulf %174, %170 : vector<2x32xf32>
    %cst_64 = arith.constant dense<0.000000e+00> : vector<2xf32>
    %176 = vector.multi_reduction <add>, %175, %cst_64 [1] : vector<2x32xf32> to vector<2xf32>
    %177 = vector.shape_cast %176 : vector<2xf32> to vector<2x1xf32>
    %cst_65 = arith.constant 3.125000e-02 : f32
    %178 = vector.broadcast %cst_65 : f32 to vector<2x1xf32>
    %179 = arith.mulf %177, %178 : vector<2x1xf32>
    %180 = vector.broadcast %179 : vector<2x1xf32> to vector<2x32xf32>
    %181 = arith.mulf %172, %180 : vector<2x32xf32>
    %182 = vector.shape_cast %181 : vector<2x32xf32> to vector<2x1x32xf32>
    %183 = vector.extract_strided_slice %85 {offsets = [1, 0, 0], sizes = [1, 8, 1], strides = [1, 1, 1]} : vector<4x8x1xf32> to vector<1x8x1xf32>
    %184 = vector.shape_cast %183 : vector<1x8x1xf32> to vector<8x1xf32>
    %185 = vector.shape_cast %184 : vector<8x1xf32> to vector<1x8x1xf32>
    %186 = vector.broadcast %182 : vector<2x1x32xf32> to vector<2x8x32xf32>
    %187 = vector.broadcast %185 : vector<1x8x1xf32> to vector<2x8x32xf32>
    %188 = arith.mulf %186, %187 : vector<2x8x32xf32>
    %189 = vector.extract_strided_slice %86 {offsets = [1, 0, 0], sizes = [1, 8, 1], strides = [1, 1, 1]} : vector<4x8x1xf32> to vector<1x8x1xf32>
    %190 = vector.shape_cast %189 : vector<1x8x1xf32> to vector<8x1xf32>
    %191 = vector.shape_cast %190 : vector<8x1xf32> to vector<1x8x1xf32>
    %192 = vector.broadcast %191 : vector<1x8x1xf32> to vector<2x8x32xf32>
    %193 = arith.addf %188, %192 : vector<2x8x32xf32>
    %194 = vector.extract_strided_slice %87 {offsets = [1, 0, 0], sizes = [1, 8, 1], strides = [1, 1, 1]} : vector<4x8x1xf32> to vector<1x8x1xf32>
    %195 = vector.shape_cast %194 : vector<1x8x1xf32> to vector<8x1xf32>
    %196 = vector.extract_strided_slice %88 {offsets = [1, 0, 0], sizes = [1, 8, 1], strides = [1, 1, 1]} : vector<4x8x1xf32> to vector<1x8x1xf32>
    %197 = vector.shape_cast %196 : vector<1x8x1xf32> to vector<8x1xf32>
    %cst_66 = arith.constant dense<0.000000e+00> : vector<8xf32>
    %198 = vector.multi_reduction <add>, %193, %cst_66 [0, 2] : vector<2x8x32xf32> to vector<8xf32>
    %199 = vector.shape_cast %198 : vector<8xf32> to vector<1x8x1xf32>
    %cst_67 = arith.constant 6.400000e+01 : f32
    %200 = vector.broadcast %cst_67 : f32 to vector<1x8x1xf32>
    %201 = arith.divf %199, %200 : vector<1x8x1xf32>
    %202 = vector.broadcast %201 : vector<1x8x1xf32> to vector<2x8x32xf32>
    %203 = arith.subf %193, %202 : vector<2x8x32xf32>
    %204 = arith.mulf %203, %203 : vector<2x8x32xf32>
    %cst_68 = arith.constant dense<0.000000e+00> : vector<8xf32>
    %205 = vector.multi_reduction <add>, %204, %cst_68 [0, 2] : vector<2x8x32xf32> to vector<8xf32>
    %206 = vector.shape_cast %205 : vector<8xf32> to vector<1x8x1xf32>
    %cst_69 = arith.constant 6.400000e+01 : f32
    %207 = vector.broadcast %cst_69 : f32 to vector<1x8x1xf32>
    %208 = arith.divf %206, %207 : vector<1x8x1xf32>
    %209 = vector.broadcast %201 : vector<1x8x1xf32> to vector<2x8x32xf32>
    %210 = arith.subf %193, %209 : vector<2x8x32xf32>
    %cst_70 = arith.constant 9.99999974E-6 : f32
    %211 = vector.broadcast %cst_70 : f32 to vector<1x8x1xf32>
    %212 = arith.addf %208, %211 : vector<1x8x1xf32>
    %213 = math.rsqrt %212 : vector<1x8x1xf32>
    %214 = vector.broadcast %213 : vector<1x8x1xf32> to vector<2x8x32xf32>
    %215 = arith.mulf %210, %214 : vector<2x8x32xf32>
    %216 = vector.shape_cast %195 : vector<8x1xf32> to vector<1x8x1xf32>
    %217 = vector.broadcast %216 : vector<1x8x1xf32> to vector<2x8x32xf32>
    %218 = arith.mulf %215, %217 : vector<2x8x32xf32>
    %219 = vector.shape_cast %197 : vector<8x1xf32> to vector<1x8x1xf32>
    %220 = vector.broadcast %219 : vector<1x8x1xf32> to vector<2x8x32xf32>
    %221 = arith.addf %218, %220 : vector<2x8x32xf32>
    %222 = arith.addf %221, %155 : vector<2x8x32xf32>
    %223 = vector.shape_cast %222 : vector<2x8x32xf32> to vector<2x8x1x32xf32>
    %224 = vector.extract_strided_slice %83 {offsets = [2, 0, 0], sizes = [1, 8, 3], strides = [1, 1, 1]} : vector<4x8x3xf32> to vector<1x8x3xf32>
    %225 = vector.shape_cast %224 : vector<1x8x3xf32> to vector<8x3xf32>
    %226 = vector.shape_cast %225 : vector<8x3xf32> to vector<1x8x3x1xf32>
    %227 = vector.broadcast %223 : vector<2x8x1x32xf32> to vector<2x8x3x32xf32>
    %228 = vector.broadcast %226 : vector<1x8x3x1xf32> to vector<2x8x3x32xf32>
    %229 = arith.mulf %227, %228 : vector<2x8x3x32xf32>
    %cst_71 = arith.constant dense<0.000000e+00> : vector<2x3x32xf32>
    %230 = vector.multi_reduction <add>, %229, %cst_71 [1] : vector<2x8x3x32xf32> to vector<2x3x32xf32>
    %231 = vector.extract_strided_slice %84 {offsets = [2, 0, 0], sizes = [1, 3, 1], strides = [1, 1, 1]} : vector<4x3x1xf32> to vector<1x3x1xf32>
    %232 = vector.shape_cast %231 : vector<1x3x1xf32> to vector<3x1xf32>
    %233 = vector.shape_cast %232 : vector<3x1xf32> to vector<1x3x1xf32>
    %234 = vector.broadcast %233 : vector<1x3x1xf32> to vector<2x3x32xf32>
    %235 = arith.addf %230, %234 : vector<2x3x32xf32>
    %236 = vector.extract_strided_slice %235 {offsets = [0, 0, 0], sizes = [2, 1, 32], strides = [1, 1, 1]} : vector<2x3x32xf32> to vector<2x1x32xf32>
    %237 = vector.shape_cast %236 : vector<2x1x32xf32> to vector<2x32xf32>
    %238 = vector.extract_strided_slice %235 {offsets = [0, 1, 0], sizes = [2, 1, 32], strides = [1, 1, 1]} : vector<2x3x32xf32> to vector<2x1x32xf32>
    %239 = vector.shape_cast %238 : vector<2x1x32xf32> to vector<2x32xf32>
    %240 = vector.extract_strided_slice %235 {offsets = [0, 2, 0], sizes = [2, 1, 32], strides = [1, 1, 1]} : vector<2x3x32xf32> to vector<2x1x32xf32>
    %241 = vector.shape_cast %240 : vector<2x1x32xf32> to vector<2x32xf32>
    %242 = arith.mulf %241, %237 : vector<2x32xf32>
    %cst_72 = arith.constant dense<0.000000e+00> : vector<2xf32>
    %243 = vector.multi_reduction <add>, %242, %cst_72 [1] : vector<2x32xf32> to vector<2xf32>
    %244 = vector.shape_cast %243 : vector<2xf32> to vector<2x1xf32>
    %cst_73 = arith.constant 3.125000e-02 : f32
    %245 = vector.broadcast %cst_73 : f32 to vector<2x1xf32>
    %246 = arith.mulf %244, %245 : vector<2x1xf32>
    %247 = vector.broadcast %246 : vector<2x1xf32> to vector<2x32xf32>
    %248 = arith.mulf %239, %247 : vector<2x32xf32>
    %249 = vector.shape_cast %248 : vector<2x32xf32> to vector<2x1x32xf32>
    %250 = vector.extract_strided_slice %85 {offsets = [2, 0, 0], sizes = [1, 8, 1], strides = [1, 1, 1]} : vector<4x8x1xf32> to vector<1x8x1xf32>
    %251 = vector.shape_cast %250 : vector<1x8x1xf32> to vector<8x1xf32>
    %252 = vector.shape_cast %251 : vector<8x1xf32> to vector<1x8x1xf32>
    %253 = vector.broadcast %249 : vector<2x1x32xf32> to vector<2x8x32xf32>
    %254 = vector.broadcast %252 : vector<1x8x1xf32> to vector<2x8x32xf32>
    %255 = arith.mulf %253, %254 : vector<2x8x32xf32>
    %256 = vector.extract_strided_slice %86 {offsets = [2, 0, 0], sizes = [1, 8, 1], strides = [1, 1, 1]} : vector<4x8x1xf32> to vector<1x8x1xf32>
    %257 = vector.shape_cast %256 : vector<1x8x1xf32> to vector<8x1xf32>
    %258 = vector.shape_cast %257 : vector<8x1xf32> to vector<1x8x1xf32>
    %259 = vector.broadcast %258 : vector<1x8x1xf32> to vector<2x8x32xf32>
    %260 = arith.addf %255, %259 : vector<2x8x32xf32>
    %261 = vector.extract_strided_slice %87 {offsets = [2, 0, 0], sizes = [1, 8, 1], strides = [1, 1, 1]} : vector<4x8x1xf32> to vector<1x8x1xf32>
    %262 = vector.shape_cast %261 : vector<1x8x1xf32> to vector<8x1xf32>
    %263 = vector.extract_strided_slice %88 {offsets = [2, 0, 0], sizes = [1, 8, 1], strides = [1, 1, 1]} : vector<4x8x1xf32> to vector<1x8x1xf32>
    %264 = vector.shape_cast %263 : vector<1x8x1xf32> to vector<8x1xf32>
    %cst_74 = arith.constant dense<0.000000e+00> : vector<8xf32>
    %265 = vector.multi_reduction <add>, %260, %cst_74 [0, 2] : vector<2x8x32xf32> to vector<8xf32>
    %266 = vector.shape_cast %265 : vector<8xf32> to vector<1x8x1xf32>
    %cst_75 = arith.constant 6.400000e+01 : f32
    %267 = vector.broadcast %cst_75 : f32 to vector<1x8x1xf32>
    %268 = arith.divf %266, %267 : vector<1x8x1xf32>
    %269 = vector.broadcast %268 : vector<1x8x1xf32> to vector<2x8x32xf32>
    %270 = arith.subf %260, %269 : vector<2x8x32xf32>
    %271 = arith.mulf %270, %270 : vector<2x8x32xf32>
    %cst_76 = arith.constant dense<0.000000e+00> : vector<8xf32>
    %272 = vector.multi_reduction <add>, %271, %cst_76 [0, 2] : vector<2x8x32xf32> to vector<8xf32>
    %273 = vector.shape_cast %272 : vector<8xf32> to vector<1x8x1xf32>
    %cst_77 = arith.constant 6.400000e+01 : f32
    %274 = vector.broadcast %cst_77 : f32 to vector<1x8x1xf32>
    %275 = arith.divf %273, %274 : vector<1x8x1xf32>
    %276 = vector.broadcast %268 : vector<1x8x1xf32> to vector<2x8x32xf32>
    %277 = arith.subf %260, %276 : vector<2x8x32xf32>
    %cst_78 = arith.constant 9.99999974E-6 : f32
    %278 = vector.broadcast %cst_78 : f32 to vector<1x8x1xf32>
    %279 = arith.addf %275, %278 : vector<1x8x1xf32>
    %280 = math.rsqrt %279 : vector<1x8x1xf32>
    %281 = vector.broadcast %280 : vector<1x8x1xf32> to vector<2x8x32xf32>
    %282 = arith.mulf %277, %281 : vector<2x8x32xf32>
    %283 = vector.shape_cast %262 : vector<8x1xf32> to vector<1x8x1xf32>
    %284 = vector.broadcast %283 : vector<1x8x1xf32> to vector<2x8x32xf32>
    %285 = arith.mulf %282, %284 : vector<2x8x32xf32>
    %286 = vector.shape_cast %264 : vector<8x1xf32> to vector<1x8x1xf32>
    %287 = vector.broadcast %286 : vector<1x8x1xf32> to vector<2x8x32xf32>
    %288 = arith.addf %285, %287 : vector<2x8x32xf32>
    %289 = arith.addf %288, %222 : vector<2x8x32xf32>
    %290 = vector.shape_cast %289 : vector<2x8x32xf32> to vector<2x8x1x32xf32>
    %291 = vector.extract_strided_slice %83 {offsets = [3, 0, 0], sizes = [1, 8, 3], strides = [1, 1, 1]} : vector<4x8x3xf32> to vector<1x8x3xf32>
    %292 = vector.shape_cast %291 : vector<1x8x3xf32> to vector<8x3xf32>
    %293 = vector.shape_cast %292 : vector<8x3xf32> to vector<1x8x3x1xf32>
    %294 = vector.broadcast %290 : vector<2x8x1x32xf32> to vector<2x8x3x32xf32>
    %295 = vector.broadcast %293 : vector<1x8x3x1xf32> to vector<2x8x3x32xf32>
    %296 = arith.mulf %294, %295 : vector<2x8x3x32xf32>
    %cst_79 = arith.constant dense<0.000000e+00> : vector<2x3x32xf32>
    %297 = vector.multi_reduction <add>, %296, %cst_79 [1] : vector<2x8x3x32xf32> to vector<2x3x32xf32>
    %298 = vector.extract_strided_slice %84 {offsets = [3, 0, 0], sizes = [1, 3, 1], strides = [1, 1, 1]} : vector<4x3x1xf32> to vector<1x3x1xf32>
    %299 = vector.shape_cast %298 : vector<1x3x1xf32> to vector<3x1xf32>
    %300 = vector.shape_cast %299 : vector<3x1xf32> to vector<1x3x1xf32>
    %301 = vector.broadcast %300 : vector<1x3x1xf32> to vector<2x3x32xf32>
    %302 = arith.addf %297, %301 : vector<2x3x32xf32>
    %303 = vector.extract_strided_slice %302 {offsets = [0, 0, 0], sizes = [2, 1, 32], strides = [1, 1, 1]} : vector<2x3x32xf32> to vector<2x1x32xf32>
    %304 = vector.shape_cast %303 : vector<2x1x32xf32> to vector<2x32xf32>
    %305 = vector.extract_strided_slice %302 {offsets = [0, 1, 0], sizes = [2, 1, 32], strides = [1, 1, 1]} : vector<2x3x32xf32> to vector<2x1x32xf32>
    %306 = vector.shape_cast %305 : vector<2x1x32xf32> to vector<2x32xf32>
    %307 = vector.extract_strided_slice %302 {offsets = [0, 2, 0], sizes = [2, 1, 32], strides = [1, 1, 1]} : vector<2x3x32xf32> to vector<2x1x32xf32>
    %308 = vector.shape_cast %307 : vector<2x1x32xf32> to vector<2x32xf32>
    %309 = arith.mulf %308, %304 : vector<2x32xf32>
    %cst_80 = arith.constant dense<0.000000e+00> : vector<2xf32>
    %310 = vector.multi_reduction <add>, %309, %cst_80 [1] : vector<2x32xf32> to vector<2xf32>
    %311 = vector.shape_cast %310 : vector<2xf32> to vector<2x1xf32>
    %cst_81 = arith.constant 3.125000e-02 : f32
    %312 = vector.broadcast %cst_81 : f32 to vector<2x1xf32>
    %313 = arith.mulf %311, %312 : vector<2x1xf32>
    %314 = vector.broadcast %313 : vector<2x1xf32> to vector<2x32xf32>
    %315 = arith.mulf %306, %314 : vector<2x32xf32>
    %316 = vector.shape_cast %315 : vector<2x32xf32> to vector<2x1x32xf32>
    %317 = vector.extract_strided_slice %85 {offsets = [3, 0, 0], sizes = [1, 8, 1], strides = [1, 1, 1]} : vector<4x8x1xf32> to vector<1x8x1xf32>
    %318 = vector.shape_cast %317 : vector<1x8x1xf32> to vector<8x1xf32>
    %319 = vector.shape_cast %318 : vector<8x1xf32> to vector<1x8x1xf32>
    %320 = vector.broadcast %316 : vector<2x1x32xf32> to vector<2x8x32xf32>
    %321 = vector.broadcast %319 : vector<1x8x1xf32> to vector<2x8x32xf32>
    %322 = arith.mulf %320, %321 : vector<2x8x32xf32>
    %323 = vector.extract_strided_slice %86 {offsets = [3, 0, 0], sizes = [1, 8, 1], strides = [1, 1, 1]} : vector<4x8x1xf32> to vector<1x8x1xf32>
    %324 = vector.shape_cast %323 : vector<1x8x1xf32> to vector<8x1xf32>
    %325 = vector.shape_cast %324 : vector<8x1xf32> to vector<1x8x1xf32>
    %326 = vector.broadcast %325 : vector<1x8x1xf32> to vector<2x8x32xf32>
    %327 = arith.addf %322, %326 : vector<2x8x32xf32>
    %328 = vector.extract_strided_slice %87 {offsets = [3, 0, 0], sizes = [1, 8, 1], strides = [1, 1, 1]} : vector<4x8x1xf32> to vector<1x8x1xf32>
    %329 = vector.shape_cast %328 : vector<1x8x1xf32> to vector<8x1xf32>
    %330 = vector.extract_strided_slice %88 {offsets = [3, 0, 0], sizes = [1, 8, 1], strides = [1, 1, 1]} : vector<4x8x1xf32> to vector<1x8x1xf32>
    %331 = vector.shape_cast %330 : vector<1x8x1xf32> to vector<8x1xf32>
    %cst_82 = arith.constant dense<0.000000e+00> : vector<8xf32>
    %332 = vector.multi_reduction <add>, %327, %cst_82 [0, 2] : vector<2x8x32xf32> to vector<8xf32>
    %333 = vector.shape_cast %332 : vector<8xf32> to vector<1x8x1xf32>
    %cst_83 = arith.constant 6.400000e+01 : f32
    %334 = vector.broadcast %cst_83 : f32 to vector<1x8x1xf32>
    %335 = arith.divf %333, %334 : vector<1x8x1xf32>
    %336 = vector.broadcast %335 : vector<1x8x1xf32> to vector<2x8x32xf32>
    %337 = arith.subf %327, %336 : vector<2x8x32xf32>
    %338 = arith.mulf %337, %337 : vector<2x8x32xf32>
    %cst_84 = arith.constant dense<0.000000e+00> : vector<8xf32>
    %339 = vector.multi_reduction <add>, %338, %cst_84 [0, 2] : vector<2x8x32xf32> to vector<8xf32>
    %340 = vector.shape_cast %339 : vector<8xf32> to vector<1x8x1xf32>
    %cst_85 = arith.constant 6.400000e+01 : f32
    %341 = vector.broadcast %cst_85 : f32 to vector<1x8x1xf32>
    %342 = arith.divf %340, %341 : vector<1x8x1xf32>
    %343 = vector.broadcast %335 : vector<1x8x1xf32> to vector<2x8x32xf32>
    %344 = arith.subf %327, %343 : vector<2x8x32xf32>
    %cst_86 = arith.constant 9.99999974E-6 : f32
    %345 = vector.broadcast %cst_86 : f32 to vector<1x8x1xf32>
    %346 = arith.addf %342, %345 : vector<1x8x1xf32>
    %347 = math.rsqrt %346 : vector<1x8x1xf32>
    %348 = vector.broadcast %347 : vector<1x8x1xf32> to vector<2x8x32xf32>
    %349 = arith.mulf %344, %348 : vector<2x8x32xf32>
    %350 = vector.shape_cast %329 : vector<8x1xf32> to vector<1x8x1xf32>
    %351 = vector.broadcast %350 : vector<1x8x1xf32> to vector<2x8x32xf32>
    %352 = arith.mulf %349, %351 : vector<2x8x32xf32>
    %353 = vector.shape_cast %331 : vector<8x1xf32> to vector<1x8x1xf32>
    %354 = vector.broadcast %353 : vector<1x8x1xf32> to vector<2x8x32xf32>
    %355 = arith.addf %352, %354 : vector<2x8x32xf32>
    %356 = arith.addf %355, %289 : vector<2x8x32xf32>
    %c0_87 = arith.constant 0 : index
    %c0_88 = arith.constant 0 : index
    %357 = vector.load %arg17[%c0_87, %c0_88] : memref<32x16xf32, #tpu.memory_space<vmem>>, vector<32x16xf32>
    %358 = vector.shape_cast %356 : vector<2x8x32xf32> to vector<16x32xf32>
    %cst_89 = arith.constant dense<0.000000e+00> : vector<16x16xf32>
    %359 = tpu.matmul %358, %357, %cst_89 {dimension_numbers = #tpu.dot_dimension_numbers<[1], [0], [0], [1], [0, 0, 1, 1], [], []>} : vector<16x32xf32>, vector<32x16xf32>, vector<16x16xf32> -> vector<16x16xf32>
    %c0_90 = arith.constant 0 : index
    %c0_91 = arith.constant 0 : index
    %360 = vector.load %arg18[%c0_90, %c0_91] : memref<1x16xf32, #tpu.memory_space<vmem>>, vector<1x16xf32>
    %361 = vector.broadcast %360 : vector<1x16xf32> to vector<16x16xf32>
    %362 = arith.addf %359, %361 : vector<16x16xf32>
    %363 = vector.shape_cast %362 : vector<16x16xf32> to vector<2x8x16xf32>
    %c0_92 = arith.constant 0 : index
    %c0_93 = arith.constant 0 : index
    %364 = vector.load %arg19[%c0_92, %c0_93] : memref<8x1xf32, #tpu.memory_space<vmem>>, vector<8x1xf32>
    %c0_94 = arith.constant 0 : index
    %c0_95 = arith.constant 0 : index
    %365 = vector.load %arg20[%c0_94, %c0_95] : memref<8x1xf32, #tpu.memory_space<vmem>>, vector<8x1xf32>
    %cst_96 = arith.constant dense<0.000000e+00> : vector<8xf32>
    %366 = vector.multi_reduction <add>, %363, %cst_96 [0, 2] : vector<2x8x16xf32> to vector<8xf32>
    %367 = vector.shape_cast %366 : vector<8xf32> to vector<1x8x1xf32>
    %cst_97 = arith.constant 3.200000e+01 : f32
    %368 = vector.broadcast %cst_97 : f32 to vector<1x8x1xf32>
    %369 = arith.divf %367, %368 : vector<1x8x1xf32>
    %370 = vector.broadcast %369 : vector<1x8x1xf32> to vector<2x8x16xf32>
    %371 = arith.subf %363, %370 : vector<2x8x16xf32>
    %372 = arith.mulf %371, %371 : vector<2x8x16xf32>
    %cst_98 = arith.constant dense<0.000000e+00> : vector<8xf32>
    %373 = vector.multi_reduction <add>, %372, %cst_98 [0, 2] : vector<2x8x16xf32> to vector<8xf32>
    %374 = vector.shape_cast %373 : vector<8xf32> to vector<1x8x1xf32>
    %cst_99 = arith.constant 3.200000e+01 : f32
    %375 = vector.broadcast %cst_99 : f32 to vector<1x8x1xf32>
    %376 = arith.divf %374, %375 : vector<1x8x1xf32>
    %377 = vector.broadcast %369 : vector<1x8x1xf32> to vector<2x8x16xf32>
    %378 = arith.subf %363, %377 : vector<2x8x16xf32>
    %cst_100 = arith.constant 9.99999974E-6 : f32
    %379 = vector.broadcast %cst_100 : f32 to vector<1x8x1xf32>
    %380 = arith.addf %376, %379 : vector<1x8x1xf32>
    %381 = math.rsqrt %380 : vector<1x8x1xf32>
    %382 = vector.broadcast %381 : vector<1x8x1xf32> to vector<2x8x16xf32>
    %383 = arith.mulf %378, %382 : vector<2x8x16xf32>
    %384 = vector.shape_cast %364 : vector<8x1xf32> to vector<1x8x1xf32>
    %385 = vector.broadcast %384 : vector<1x8x1xf32> to vector<2x8x16xf32>
    %386 = arith.mulf %383, %385 : vector<2x8x16xf32>
    %387 = vector.shape_cast %365 : vector<8x1xf32> to vector<1x8x1xf32>
    %388 = vector.broadcast %387 : vector<1x8x1xf32> to vector<2x8x16xf32>
    %389 = arith.addf %386, %388 : vector<2x8x16xf32>
    %cst_101 = arith.constant 0.000000e+00 : f32
    %390 = vector.broadcast %cst_101 : f32 to vector<2x8x16xf32>
    %391 = arith.maximumf %389, %390 : vector<2x8x16xf32>
    %c0_102 = arith.constant 0 : index
    %c0_103 = arith.constant 0 : index
    %392 = vector.load %arg21[%c0_102, %c0_103] : memref<16x8xf32, #tpu.memory_space<vmem>>, vector<16x8xf32>
    %393 = vector.shape_cast %391 : vector<2x8x16xf32> to vector<16x16xf32>
    %cst_104 = arith.constant dense<0.000000e+00> : vector<16x8xf32>
    %394 = tpu.matmul %393, %392, %cst_104 {dimension_numbers = #tpu.dot_dimension_numbers<[1], [0], [0], [1], [0, 0, 1, 1], [], []>} : vector<16x16xf32>, vector<16x8xf32>, vector<16x8xf32> -> vector<16x8xf32>
    %c0_105 = arith.constant 0 : index
    %c0_106 = arith.constant 0 : index
    %395 = vector.load %arg22[%c0_105, %c0_106] : memref<1x8xf32, #tpu.memory_space<vmem>>, vector<1x8xf32>
    %396 = vector.broadcast %395 : vector<1x8xf32> to vector<16x8xf32>
    %397 = arith.addf %394, %396 : vector<16x8xf32>
    %398 = vector.shape_cast %397 : vector<16x8xf32> to vector<2x8x8xf32>
    %cst_107 = arith.constant 0.000000e+00 : f32
    %399 = vector.broadcast %cst_107 : f32 to vector<2x8x8xf32>
    %400 = arith.maximumf %398, %399 : vector<2x8x8xf32>
    %c0_108 = arith.constant 0 : index
    %c0_109 = arith.constant 0 : index
    %401 = vector.load %arg23[%c0_108, %c0_109] : memref<8x8xf32, #tpu.memory_space<vmem>>, vector<8x8xf32>
    %402 = vector.shape_cast %400 : vector<2x8x8xf32> to vector<16x8xf32>
    %cst_110 = arith.constant dense<0.000000e+00> : vector<16x8xf32>
    %403 = tpu.matmul %402, %401, %cst_110 {dimension_numbers = #tpu.dot_dimension_numbers<[1], [0], [0], [1], [0, 0, 1, 1], [], []>} : vector<16x8xf32>, vector<8x8xf32>, vector<16x8xf32> -> vector<16x8xf32>
    %c0_111 = arith.constant 0 : index
    %c0_112 = arith.constant 0 : index
    %404 = vector.load %arg24[%c0_111, %c0_112] : memref<1x8xf32, #tpu.memory_space<vmem>>, vector<1x8xf32>
    %405 = vector.broadcast %404 : vector<1x8xf32> to vector<16x8xf32>
    %406 = arith.addf %403, %405 : vector<16x8xf32>
    %407 = vector.shape_cast %406 : vector<16x8xf32> to vector<2x8x8xf32>
    %408 = arith.negf %407 : vector<2x8x8xf32>
    %409 = math.exp %408 : vector<2x8x8xf32>
    %cst_113 = arith.constant 1.000000e+00 : f32
    %410 = vector.broadcast %cst_113 : f32 to vector<2x8x8xf32>
    %411 = arith.addf %410, %409 : vector<2x8x8xf32>
    %412 = arith.divf %410, %411 : vector<2x8x8xf32>
    %c0_114 = arith.constant 0 : index
    %c0_115 = arith.constant 0 : index
    %c0_116 = arith.constant 0 : index
    %413 = vector.load %arg25[%c0_114, %c0_115, %c0_116] : memref<2x8x8xf32, #tpu.memory_space<vmem>>, vector<2x8x8xf32>
    tpu.vector_store %arg25[%c0_114, %c0_115, %c0_116], %412 {strides = array<i32>} : memref<2x8x8xf32, #tpu.memory_space<vmem>>, vector<2x8x8xf32>,
    return
  }
}

</mosaic_0001>

<llo_original>
// kernel: generator_forward.1
$region0: #{generator_forward.1}
  #allocation0 [shape = 'u32[]', space=smem, size = 0x4, offset = 0x4, fixed_abs, tag = 'smem constant byte address 0x4 - core index']
  #allocation1 [shape = 'u32[144,128]{1,0:T(1,128)}', space=vmem, size = 0x12000, scoped, tag = 'internal scratch']
  %s0 = inlined_call_operand.vmem [shape: f32[2,8,8], index: 0, kind: input, shape index: {}]
  %s1 = inlined_call_operand.vmem [shape: f32[8,16], index: 1, kind: input, shape index: {}]
  %s2 = inlined_call_operand.vmem [shape: f32[1,16], index: 2, kind: input, shape index: {}]
  %s3 = inlined_call_operand.vmem [shape: f32[8,1], index: 3, kind: input, shape index: {}]
  %s4 = inlined_call_operand.vmem [shape: f32[8,1], index: 4, kind: input, shape index: {}]
  %s5 = inlined_call_operand.vmem [shape: f32[16,32], index: 5, kind: input, shape index: {}]
  %s6 = inlined_call_operand.vmem [shape: f32[1,32], index: 6, kind: input, shape index: {}]
  %s7 = inlined_call_operand.vmem [shape: f32[8,1], index: 7, kind: input, shape index: {}]
  %s8 = inlined_call_operand.vmem [shape: f32[8,1], index: 8, kind: input, shape index: {}]
  %s9 = inlined_call_operand.vmem [shape: f32[32,32], index: 9, kind: input, shape index: {}]
  %s10 = inlined_call_operand.vmem [shape: f32[1,32], index: 10, kind: input, shape index: {}]
  %s11 = inlined_call_operand.vmem [shape: f32[4,8,3], index: 11, kind: input, shape index: {}]
  %s12 = inlined_call_operand.vmem [shape: f32[4,3,1], index: 12, kind: input, shape index: {}]
  %s13 = inlined_call_operand.vmem [shape: f32[4,8,1], index: 13, kind: input, shape index: {}]
  %s14 = inlined_call_operand.vmem [shape: f32[4,8,1], index: 14, kind: input, shape index: {}]
  %s15 = inlined_call_operand.vmem [shape: f32[4,8,1], index: 15, kind: input, shape index: {}]
  %s16 = inlined_call_operand.vmem [shape: f32[4,8,1], index: 16, kind: input, shape index: {}]
  %s17 = inlined_call_operand.vmem [shape: f32[32,16], index: 17, kind: input, shape index: {}]
  %s18 = inlined_call_operand.vmem [shape: f32[1,16], index: 18, kind: input, shape index: {}]
  %s19 = inlined_call_operand.vmem [shape: f32[8,1], index: 19, kind: input, shape index: {}]
  %s20 = inlined_call_operand.vmem [shape: f32[8,1], index: 20, kind: input, shape index: {}]
  %s21 = inlined_call_operand.vmem [shape: f32[16,8], index: 21, kind: input, shape index: {}]
  %s22 = inlined_call_operand.vmem [shape: f32[1,8], index: 22, kind: input, shape index: {}]
  %s23 = inlined_call_operand.vmem [shape: f32[8,8], index: 23, kind: input, shape index: {}]
  %s24 = inlined_call_operand.vmem [shape: f32[1,8], index: 24, kind: input, shape index: {}]
  %s25 = inlined_call_operand.hbm [shape: f32[2,8,8], index: 25, kind: output, shape index: {}]
  %s26 = sld [smem:[#allocation0]]
  $region110: #{generator_forward.1} parent=0
    _
  %s28 = ssub.s32 1, %s26
  %s29 = scalar_select 0, %s28, %s26
  $region1: #{generator_forward.1} parent=0
    #allocation2 [shape = 'u8[8192]{0}', space=vmem, size = 0x2000, scoped, tag = 'output window, operand 0, single buffered']
    #allocation3 [shape = 's32[1]{0}', space=sflag, size = 0x4, scoped, tag = 'scoped memory for generator_forward.1']
    %30 = vsyncpa [#allocation3], 0
    // Predicated region
    $region2: #{generator_forward.1} parent=1 // pred_check
      _
    $region3: #{generator_forward.1} parent=1 // pred_check_branch
      %32 = sbr.rel (0) target = $region5
    $region4: #{generator_forward.1} parent=1 // pred_region
      _
    $region5: #{generator_forward.1} parent=1 // pred_fallthru
      _
    // Predicated region
    $region6: #{generator_forward.1} parent=1 // pred_check
      _
    $region7: #{generator_forward.1} parent=1 // pred_check_branch
      %34 = sbr.rel (0) target = $region9
    $region8: #{generator_forward.1} parent=1 // pred_region
      _
    $region9: #{generator_forward.1} parent=1 // pred_fallthru
      _
    // Predicated region
    $region10: #{generator_forward.1} parent=1 // pred_check
      _
    $region11: #{generator_forward.1} parent=1 // pred_check_branch
      %36 = sbr.rel (0) target = $region13
    $region12: #{generator_forward.1} parent=1 // pred_region
      _
    $region13: #{generator_forward.1} parent=1 // pred_fallthru
      _
    // Predicated region
    $region14: #{generator_forward.1} parent=1 // pred_check
      _
    $region15: #{generator_forward.1} parent=1 // pred_check_branch
      %38 = sbr.rel (0) target = $region17
    $region16: #{generator_forward.1} parent=1 // pred_region
      _
    $region17: #{generator_forward.1} parent=1 // pred_fallthru
      _
    // Predicated region
    $region18: #{generator_forward.1} parent=1 // pred_check
      _
    $region19: #{generator_forward.1} parent=1 // pred_check_branch
      %40 = sbr.rel (0) target = $region21
    $region20: #{generator_forward.1} parent=1 // pred_region
      _
    $region21: #{generator_forward.1} parent=1 // pred_fallthru
      _
    // Predicated region
    $region22: #{generator_forward.1} parent=1 // pred_check
      _
    $region23: #{generator_forward.1} parent=1 // pred_check_branch
      %42 = sbr.rel (0) target = $region25
    $region24: #{generator_forward.1} parent=1 // pred_region
      _
    $region25: #{generator_forward.1} parent=1 // pred_fallthru
      _
    // Predicated region
    $region26: #{generator_forward.1} parent=1 // pred_check
      _
    $region27: #{generator_forward.1} parent=1 // pred_check_branch
      %44 = sbr.rel (0) target = $region29
    $region28: #{generator_forward.1} parent=1 // pred_region
      _
    $region29: #{generator_forward.1} parent=1 // pred_fallthru
      _
    // Predicated region
    $region30: #{generator_forward.1} parent=1 // pred_check
      _
    $region31: #{generator_forward.1} parent=1 // pred_check_branch
      %46 = sbr.rel (0) target = $region33
    $region32: #{generator_forward.1} parent=1 // pred_region
      _
    $region33: #{generator_forward.1} parent=1 // pred_fallthru
      _
    // Predicated region
    $region34: #{generator_forward.1} parent=1 // pred_check
      _
    $region35: #{generator_forward.1} parent=1 // pred_check_branch
      %48 = sbr.rel (0) target = $region37
    $region36: #{generator_forward.1} parent=1 // pred_region
      _
    $region37: #{generator_forward.1} parent=1 // pred_fallthru
      _
    // Predicated region
    $region38: #{generator_forward.1} parent=1 // pred_check
      _
    $region39: #{generator_forward.1} parent=1 // pred_check_branch
      %50 = sbr.rel (0) target = $region41
    $region40: #{generator_forward.1} parent=1 // pred_region
      _
    $region41: #{generator_forward.1} parent=1 // pred_fallthru
      _
    // Predicated region
    $region42: #{generator_forward.1} parent=1 // pred_check
      _
    $region43: #{generator_forward.1} parent=1 // pred_check_branch
      %52 = sbr.rel (0) target = $region45
    $region44: #{generator_forward.1} parent=1 // pred_region
      _
    $region45: #{generator_forward.1} parent=1 // pred_fallthru
      _
    // Predicated region
    $region46: #{generator_forward.1} parent=1 // pred_check
      _
    $region47: #{generator_forward.1} parent=1 // pred_check_branch
      %54 = sbr.rel (0) target = $region49
    $region48: #{generator_forward.1} parent=1 // pred_region
      _
    $region49: #{generator_forward.1} parent=1 // pred_fallthru
      _
    // Predicated region
    $region50: #{generator_forward.1} parent=1 // pred_check
      _
    $region51: #{generator_forward.1} parent=1 // pred_check_branch
      %56 = sbr.rel (0) target = $region53
    $region52: #{generator_forward.1} parent=1 // pred_region
      _
    $region53: #{generator_forward.1} parent=1 // pred_fallthru
      _
    // Predicated region
    $region54: #{generator_forward.1} parent=1 // pred_check
      _
    $region55: #{generator_forward.1} parent=1 // pred_check_branch
      %58 = sbr.rel (0) target = $region57
    $region56: #{generator_forward.1} parent=1 // pred_region
      _
    $region57: #{generator_forward.1} parent=1 // pred_fallthru
      _
    // Predicated region
    $region58: #{generator_forward.1} parent=1 // pred_check
      _
    $region59: #{generator_forward.1} parent=1 // pred_check_branch
      %60 = sbr.rel (0) target = $region61
    $region60: #{generator_forward.1} parent=1 // pred_region
      _
    $region61: #{generator_forward.1} parent=1 // pred_fallthru
      _
    // Predicated region
    $region62: #{generator_forward.1} parent=1 // pred_check
      _
    $region63: #{generator_forward.1} parent=1 // pred_check_branch
      %62 = sbr.rel (0) target = $region65
    $region64: #{generator_forward.1} parent=1 // pred_region
      _
    $region65: #{generator_forward.1} parent=1 // pred_fallthru
      _
    // Predicated region
    $region66: #{generator_forward.1} parent=1 // pred_check
      _
    $region67: #{generator_forward.1} parent=1 // pred_check_branch
      %64 = sbr.rel (0) target = $region69
    $region68: #{generator_forward.1} parent=1 // pred_region
      _
    $region69: #{generator_forward.1} parent=1 // pred_fallthru
      _
    // Predicated region
    $region70: #{generator_forward.1} parent=1 // pred_check
      _
    $region71: #{generator_forward.1} parent=1 // pred_check_branch
      %66 = sbr.rel (0) target = $region73
    $region72: #{generator_forward.1} parent=1 // pred_region
      _
    $region73: #{generator_forward.1} parent=1 // pred_fallthru
      _
    // Predicated region
    $region74: #{generator_forward.1} parent=1 // pred_check
      _
    $region75: #{generator_forward.1} parent=1 // pred_check_branch
      %68 = sbr.rel (0) target = $region77
    $region76: #{generator_forward.1} parent=1 // pred_region
      _
    $region77: #{generator_forward.1} parent=1 // pred_fallthru
      _
    // Predicated region
    $region78: #{generator_forward.1} parent=1 // pred_check
      _
    $region79: #{generator_forward.1} parent=1 // pred_check_branch
      %70 = sbr.rel (0) target = $region81
    $region80: #{generator_forward.1} parent=1 // pred_region
      _
    $region81: #{generator_forward.1} parent=1 // pred_fallthru
      _
    // Predicated region
    $region82: #{generator_forward.1} parent=1 // pred_check
      _
    $region83: #{generator_forward.1} parent=1 // pred_check_branch
      %72 = sbr.rel (0) target = $region85
    $region84: #{generator_forward.1} parent=1 // pred_region
      _
    $region85: #{generator_forward.1} parent=1 // pred_fallthru
      _
    // Predicated region
    $region86: #{generator_forward.1} parent=1 // pred_check
      _
    $region87: #{generator_forward.1} parent=1 // pred_check_branch
      %74 = sbr.rel (0) target = $region89
    $region88: #{generator_forward.1} parent=1 // pred_region
      _
    $region89: #{generator_forward.1} parent=1 // pred_fallthru
      _
    // Predicated region
    $region90: #{generator_forward.1} parent=1 // pred_check
      _
    $region91: #{generator_forward.1} parent=1 // pred_check_branch
      %76 = sbr.rel (0) target = $region93
    $region92: #{generator_forward.1} parent=1 // pred_region
      _
    $region93: #{generator_forward.1} parent=1 // pred_fallthru
      _
    // Predicated region
    $region94: #{generator_forward.1} parent=1 // pred_check
      _
    $region95: #{generator_forward.1} parent=1 // pred_check_branch
      %78 = sbr.rel (0) target = $region97
    $region96: #{generator_forward.1} parent=1 // pred_region
      _
    $region97: #{generator_forward.1} parent=1 // pred_fallthru
      _
    // Predicated region
    $region98: #{generator_forward.1} parent=1 // pred_check
      _
    $region99: #{generator_forward.1} parent=1 // pred_check_branch
      %80 = sbr.rel (0) target = $region101
    $region100: #{generator_forward.1} parent=1 // pred_region
      _
    $region101: #{generator_forward.1} parent=1 // pred_fallthru
      _
    %v81 = vld [vmem:[%s0] sm:$0xff]
    %v82 = vld [vmem:[%s0 + $0x8] sm:$0xff]
    %v83 = vld [vmem:[%s1] sm:$0xff]
    %v84 = vld [vmem:[%s2] sm:$0x1]
    %v86 = vlaneseq
    %v87 = vshrl.u32 %v86, 7
    %v88 = vsub.s32 0, %v87
    %v89 = vrot.slane %v84, %v88
    %vm91 = vcmask 64512
    %v93 = vsel %vm91, %v81, 0
    %v96 = vsel %vm91, %v82, 0
    %98 = vmatprep.subr.mxu0 0.0
    %99 = vmatpush1.msra.mxu0 0.0
    %100 = vmatprep.subr.mxu0 0.0
    %101 = vmatpush1.msra.mxu0 0.0
    %102 = vmatprep.subr.mxu0 0.0
    %103 = vmatpush1.msra.mxu0 0.0
    %104 = vmatprep.subr.mxu0 0.0
    %105 = vmatpush1.msra.mxu0 0.0
    %106 = vmatprep.subr.mxu0 0.0
    %107 = vmatpush1.msra.mxu0 0.0
    %108 = vmatprep.subr.mxu0 0.0
    %109 = vmatpush1.msra.mxu0 0.0
    %110 = vmatprep.subr.mxu0 0.0
    %111 = vmatpush1.msra.mxu0 0.0
    %112 = vmatprep.subr.mxu0 0.0
    %113 = vmatpush1.msra.mxu0 0.0
    %114 = vmatprep.subr.mxu0 0.0
    %115 = vmatpush1.msra.mxu0 0.0
    %116 = vmatprep.subr.mxu0 0.0
    %117 = vmatpush1.msra.mxu0 0.0
    %118 = vmatprep.subr.mxu0 0.0
    %119 = vmatpush1.msra.mxu0 0.0
    %120 = vmatprep.subr.mxu0 0.0
    %121 = vmatpush1.msra.mxu0 0.0
    %122 = vmatprep.subr.mxu0 0.0
    %123 = vmatpush1.msra.mxu0 0.0
    %124 = vmatprep.subr.mxu0 0.0
    %125 = vmatpush1.msra.mxu0 0.0
    %126 = vmatprep.subr.mxu0 0.0
    %127 = vmatpush1.msra.mxu0 0.0
    %128 = vmatprep.subr.mxu0 0.0
    %129 = vmatpush1.msra.mxu0 %v83
    %130 = vmatprep.subr.mxu0 0.0
    %131 = vmatpush2.msra.mxu0 0.0
    %132 = vmatprep.subr.mxu0 0.0
    %133 = vmatpush2.msra.mxu0 0.0
    %134 = vmatprep.subr.mxu0 0.0
    %135 = vmatpush2.msra.mxu0 0.0
    %136 = vmatprep.subr.mxu0 0.0
    %137 = vmatpush2.msra.mxu0 0.0
    %138 = vmatprep.subr.mxu0 0.0
    %139 = vmatpush2.msra.mxu0 0.0
    %140 = vmatprep.subr.mxu0 0.0
    %141 = vmatpush2.msra.mxu0 0.0
    %142 = vmatprep.subr.mxu0 0.0
    %143 = vmatpush2.msra.mxu0 0.0
    %144 = vmatprep.subr.mxu0 0.0
    %145 = vmatpush2.msra.mxu0 0.0
    %146 = vmatprep.subr.mxu0 0.0
    %147 = vmatpush2.msra.mxu0 0.0
    %148 = vmatprep.subr.mxu0 0.0
    %149 = vmatpush2.msra.mxu0 0.0
    %150 = vmatprep.subr.mxu0 0.0
    %151 = vmatpush2.msra.mxu0 0.0
    %152 = vmatprep.subr.mxu0 0.0
    %153 = vmatpush2.msra.mxu0 0.0
    %154 = vmatprep.subr.mxu0 0.0
    %155 = vmatpush2.msra.mxu0 0.0
    %156 = vmatprep.subr.mxu0 0.0
    %157 = vmatpush2.msra.mxu0 0.0
    %158 = vmatprep.subr.mxu0 0.0
    %159 = vmatpush2.msra.mxu0 0.0
    %160 = vmatprep.subr.mxu0 0.0
    %161 = vmatpush2.msra.mxu0 0.0
    %162 = vmatprep.mubr.f32.mxu0 0.0
    %163 = vmatmul.mubr.f32.gmra.mxu0 %v93
    %v164 = vpop.f32.mrf.mxu0
    %v165 = vadd.f32 %v89, %v164
    %v166 = vpop.f32.mrf.mxu0
    %167 = vmatprep.mubr.f32.mxu0 0.0
    %168 = vmatmul.mubr.f32.gmra.mxu0 %v96
    %v169 = vpop.f32.mrf.mxu0
    %v170 = vadd.f32 %v89, %v169
    %v171 = vpop.f32.mrf.mxu0
    %172 = vdwg.mxu0
    %v173 = vld [vmem:[%s3] sm:$0xff]
    %v174 = vld [vmem:[%s4] sm:$0xff]
    %vm175 = vcmask 130048
    %v176 = vsel %vm175, %v165, 0.0
    %v177 = vsel %vm175, %v170, 0.0
    %v178 = vadd.f32 %v176, %v177
    %179 = vadd.xlane.f32.xlu0 %v178
    %v180 = vpop.xlane.xlu0 %179
    %v181 = vrcp.pop 32.0
    %v182 = vmul.f32 %v180, %v181
    %v183 = vsub.f32 %v165, %v182
    %v184 = vsub.f32 %v170, %v182
    %v185 = vmul.f32 %v183, %v183
    %v186 = vmul.f32 %v184, %v184
    %v187 = vsel %vm175, %v185, 0.0
    %v188 = vsel %vm175, %v186, 0.0
    %v189 = vadd.f32 %v187, %v188
    %190 = vadd.xlane.f32.xlu0 %v189
    %v191 = vpop.xlane.xlu0 %190
    %v192 = vmul.f32 %v191, %v181
    %v193 = vadd.f32 %v192, 1e-05
    %v194 = vrsqrt.pop %v193
    %v195 = vmul.f32 %v183, %v194
    %v196 = vmul.f32 %v184, %v194
    %198 = vset.pattern.permute.xlu0 0
    %199 = vperm.xlu0 %198, %v173
    %v200 = vpop.permute.xlu0 %199
    %v202 = vmul.f32 %v195, %v200
    %v203 = vmul.f32 %v196, %v200
    %205 = vset.pattern.permute.xlu0 0
    %206 = vperm.xlu0 %205, %v174
    %v207 = vpop.permute.xlu0 %206
    %v209 = vadd.f32 %v202, %v207
    %v210 = vadd.f32 %v203, %v207
    %v211 = vmax.f32 %v209, 0.0
    %v212 = vmax.f32 %v210, 0.0
    %v213 = vld [vmem:[%s5] sm:$0xff]
    %v214 = vld [vmem:[%s5 + $0x8] sm:$0xff]
    %v215 = vld [vmem:[%s6] sm:$0x1]
    %v217 = vlaneseq
    %v218 = vshrl.u32 %v217, 7
    %v219 = vsub.s32 0, %v218
    %v220 = vrot.slane %v215, %v219
    %v223 = vsel %vm175, %v211, 0
    %v226 = vsel %vm175, %v212, 0
    %228 = vmatprep.subr.mxu0 0.0
    %229 = vmatpush1.msra.mxu0 0.0
    %230 = vmatprep.subr.mxu0 0.0
    %231 = vmatpush1.msra.mxu0 0.0
    %232 = vmatprep.subr.mxu0 0.0
    %233 = vmatpush1.msra.mxu0 0.0
    %234 = vmatprep.subr.mxu0 0.0
    %235 = vmatpush1.msra.mxu0 0.0
    %236 = vmatprep.subr.mxu0 0.0
    %237 = vmatpush1.msra.mxu0 0.0
    %238 = vmatprep.subr.mxu0 0.0
    %239 = vmatpush1.msra.mxu0 0.0
    %240 = vmatprep.subr.mxu0 0.0
    %241 = vmatpush1.msra.mxu0 0.0
    %242 = vmatprep.subr.mxu0 0.0
    %243 = vmatpush1.msra.mxu0 0.0
    %244 = vmatprep.subr.mxu0 0.0
    %245 = vmatpush1.msra.mxu0 0.0
    %246 = vmatprep.subr.mxu0 0.0
    %247 = vmatpush1.msra.mxu0 0.0
    %248 = vmatprep.subr.mxu0 0.0
    %249 = vmatpush1.msra.mxu0 0.0
    %250 = vmatprep.subr.mxu0 0.0
    %251 = vmatpush1.msra.mxu0 0.0
    %252 = vmatprep.subr.mxu0 0.0
    %253 = vmatpush1.msra.mxu0 0.0
    %254 = vmatprep.subr.mxu0 0.0
    %255 = vmatpush1.msra.mxu0 0.0
    %256 = vmatprep.subr.mxu0 0.0
    %257 = vmatpush1.msra.mxu0 %v214
    %258 = vmatprep.subr.mxu0 0.0
    %259 = vmatpush1.msra.mxu0 %v213
    %260 = vmatprep.subr.mxu0 0.0
    %261 = vmatpush2.msra.mxu0 0.0
    %262 = vmatprep.subr.mxu0 0.0
    %263 = vmatpush2.msra.mxu0 0.0
    %264 = vmatprep.subr.mxu0 0.0
    %265 = vmatpush2.msra.mxu0 0.0
    %266 = vmatprep.subr.mxu0 0.0
    %267 = vmatpush2.msra.mxu0 0.0
    %268 = vmatprep.subr.mxu0 0.0
    %269 = vmatpush2.msra.mxu0 0.0
    %270 = vmatprep.subr.mxu0 0.0
    %271 = vmatpush2.msra.mxu0 0.0
    %272 = vmatprep.subr.mxu0 0.0
    %273 = vmatpush2.msra.mxu0 0.0
    %274 = vmatprep.subr.mxu0 0.0
    %275 = vmatpush2.msra.mxu0 0.0
    %276 = vmatprep.subr.mxu0 0.0
    %277 = vmatpush2.msra.mxu0 0.0
    %278 = vmatprep.subr.mxu0 0.0
    %279 = vmatpush2.msra.mxu0 0.0
    %280 = vmatprep.subr.mxu0 0.0
    %281 = vmatpush2.msra.mxu0 0.0
    %282 = vmatprep.subr.mxu0 0.0
    %283 = vmatpush2.msra.mxu0 0.0
    %284 = vmatprep.subr.mxu0 0.0
    %285 = vmatpush2.msra.mxu0 0.0
    %286 = vmatprep.subr.mxu0 0.0
    %287 = vmatpush2.msra.mxu0 0.0
    %288 = vmatprep.subr.mxu0 0.0
    %289 = vmatpush2.msra.mxu0 0.0
    %290 = vmatprep.subr.mxu0 0.0
    %291 = vmatpush2.msra.mxu0 0.0
    %292 = vmatprep.mubr.f32.mxu0 0.0
    %293 = vmatmul.mubr.f32.gmra.mxu0 %v223
    %v294 = vpop.f32.mrf.mxu0
    %v295 = vadd.f32 %v220, %v294
    %v296 = vpop.f32.mrf.mxu0
    %297 = vmatprep.mubr.f32.mxu0 0.0
    %298 = vmatmul.mubr.f32.gmra.mxu0 %v226
    %v299 = vpop.f32.mrf.mxu0
    %v300 = vadd.f32 %v220, %v299
    %v301 = vpop.f32.mrf.mxu0
    %302 = vdwg.mxu0
    %v303 = vld [vmem:[%s7] sm:$0xff]
    %v304 = vld [vmem:[%s8] sm:$0xff]
    %vm305 = vcmask 261120
    %v306 = vsel %vm305, %v295, 0.0
    %v307 = vsel %vm305, %v300, 0.0
    %v308 = vadd.f32 %v306, %v307
    %309 = vadd.xlane.f32.xlu0 %v308
    %v310 = vpop.xlane.xlu0 %309
    %v311 = vrcp.pop 64.0
    %v312 = vmul.f32 %v310, %v311
    %v313 = vsub.f32 %v295, %v312
    %v314 = vsub.f32 %v300, %v312
    %v315 = vmul.f32 %v313, %v313
    %v316 = vmul.f32 %v314, %v314
    %v317 = vsel %vm305, %v315, 0.0
    %v318 = vsel %vm305, %v316, 0.0
    %v319 = vadd.f32 %v317, %v318
    %320 = vadd.xlane.f32.xlu0 %v319
    %v321 = vpop.xlane.xlu0 %320
    %v322 = vmul.f32 %v321, %v311
    %v323 = vadd.f32 %v322, 1e-05
    %v324 = vrsqrt.pop %v323
    %v325 = vmul.f32 %v313, %v324
    %v326 = vmul.f32 %v314, %v324
    %328 = vset.pattern.permute.xlu0 0
    %329 = vperm.xlu0 %328, %v303
    %v330 = vpop.permute.xlu0 %329
    %v332 = vmul.f32 %v325, %v330
    %v333 = vmul.f32 %v326, %v330
    %335 = vset.pattern.permute.xlu0 0
    %336 = vperm.xlu0 %335, %v304
    %v337 = vpop.permute.xlu0 %336
    %v339 = vadd.f32 %v332, %v337
    %v340 = vadd.f32 %v333, %v337
    %v341 = vmax.f32 %v339, 0.0
    %v342 = vmax.f32 %v340, 0.0
    %v343 = vld [vmem:[%s9] sm:$0xff]
    %v344 = vld [vmem:[%s9 + $0x8] sm:$0xff]
    %v345 = vld [vmem:[%s9 + $0x10] sm:$0xff]
    %v346 = vld [vmem:[%s9 + $0x18] sm:$0xff]
    %v347 = vld [vmem:[%s10] sm:$0x1]
    %v349 = vlaneseq
    %v350 = vshrl.u32 %v349, 7
    %v351 = vsub.s32 0, %v350
    %v352 = vrot.slane %v347, %v351
    %v355 = vsel %vm305, %v341, 0
    %v358 = vsel %vm305, %v342, 0
    %360 = vmatprep.subr.mxu0 0.0
    %361 = vmatpush1.msra.mxu0 0.0
    %362 = vmatprep.subr.mxu0 0.0
    %363 = vmatpush1.msra.mxu0 0.0
    %364 = vmatprep.subr.mxu0 0.0
    %365 = vmatpush1.msra.mxu0 0.0
    %366 = vmatprep.subr.mxu0 0.0
    %367 = vmatpush1.msra.mxu0 0.0
    %368 = vmatprep.subr.mxu0 0.0
    %369 = vmatpush1.msra.mxu0 0.0
    %370 = vmatprep.subr.mxu0 0.0
    %371 = vmatpush1.msra.mxu0 0.0
    %372 = vmatprep.subr.mxu0 0.0
    %373 = vmatpush1.msra.mxu0 0.0
    %374 = vmatprep.subr.mxu0 0.0
    %375 = vmatpush1.msra.mxu0 0.0
    %376 = vmatprep.subr.mxu0 0.0
    %377 = vmatpush1.msra.mxu0 0.0
    %378 = vmatprep.subr.mxu0 0.0
    %379 = vmatpush1.msra.mxu0 0.0
    %380 = vmatprep.subr.mxu0 0.0
    %381 = vmatpush1.msra.mxu0 0.0
    %382 = vmatprep.subr.mxu0 0.0
    %383 = vmatpush1.msra.mxu0 0.0
    %384 = vmatprep.subr.mxu0 0.0
    %385 = vmatpush1.msra.mxu0 %v346
    %386 = vmatprep.subr.mxu0 0.0
    %387 = vmatpush1.msra.mxu0 %v345
    %388 = vmatprep.subr.mxu0 0.0
    %389 = vmatpush1.msra.mxu0 %v344
    %390 = vmatprep.subr.mxu0 0.0
    %391 = vmatpush1.msra.mxu0 %v343
    %392 = vmatprep.subr.mxu0 0.0
    %393 = vmatpush2.msra.mxu0 0.0
    %394 = vmatprep.subr.mxu0 0.0
    %395 = vmatpush2.msra.mxu0 0.0
    %396 = vmatprep.subr.mxu0 0.0
    %397 = vmatpush2.msra.mxu0 0.0
    %398 = vmatprep.subr.mxu0 0.0
    %399 = vmatpush2.msra.mxu0 0.0
    %400 = vmatprep.subr.mxu0 0.0
    %401 = vmatpush2.msra.mxu0 0.0
    %402 = vmatprep.subr.mxu0 0.0
    %403 = vmatpush2.msra.mxu0 0.0
    %404 = vmatprep.subr.mxu0 0.0
    %405 = vmatpush2.msra.mxu0 0.0
    %406 = vmatprep.subr.mxu0 0.0
    %407 = vmatpush2.msra.mxu0 0.0
    %408 = vmatprep.subr.mxu0 0.0
    %409 = vmatpush2.msra.mxu0 0.0
    %410 = vmatprep.subr.mxu0 0.0
    %411 = vmatpush2.msra.mxu0 0.0
    %412 = vmatprep.subr.mxu0 0.0
    %413 = vmatpush2.msra.mxu0 0.0
    %414 = vmatprep.subr.mxu0 0.0
    %415 = vmatpush2.msra.mxu0 0.0
    %416 = vmatprep.subr.mxu0 0.0
    %417 = vmatpush2.msra.mxu0 0.0
    %418 = vmatprep.subr.mxu0 0.0
    %419 = vmatpush2.msra.mxu0 0.0
    %420 = vmatprep.subr.mxu0 0.0
    %421 = vmatpush2.msra.mxu0 0.0
    %422 = vmatprep.subr.mxu0 0.0
    %423 = vmatpush2.msra.mxu0 0.0
    %424 = vmatprep.mubr.f32.mxu0 0.0
    %425 = vmatmul.mubr.f32.gmra.mxu0 %v355
    %v426 = vpop.f32.mrf.mxu0
    %v427 = vadd.f32 %v352, %v426
    %v428 = vpop.f32.mrf.mxu0
    %429 = vmatprep.mubr.f32.mxu0 0.0
    %430 = vmatmul.mubr.f32.gmra.mxu0 %v358
    %v431 = vpop.f32.mrf.mxu0
    %v432 = vadd.f32 %v352, %v431
    %v433 = vpop.f32.mrf.mxu0
    %434 = vdwg.mxu0
    %v435 = vxor.u32 %v427, 2147483648
    %v436 = vxor.u32 %v432, 2147483648
    %v437 = vmul.f32 %v435, 1.442695
    %v438 = vpow.pop %v437
    %v439 = vmul.f32 %v436, 1.442695
    %v440 = vpow.pop %v439
    %v441 = vadd.f32 %v438, 1.0
    %v442 = vadd.f32 %v440, 1.0
    %v443 = vrcp.pop %v441
    %v444 = vmul.f32 1.0, %v443
    %v445 = vrcp.pop %v442
    %v446 = vmul.f32 1.0, %v445
    %v447 = vld [vmem:[%s11] sm:$0xff]
    %v448 = vld [vmem:[%s11 + $0x8] sm:$0xff]
    %v449 = vld [vmem:[%s11 + $0x10] sm:$0xff]
    %v450 = vld [vmem:[%s11 + $0x18] sm:$0xff]
    %v451 = vld [vmem:[%s12] sm:$0x7]
    %v452 = vld [vmem:[%s12 + $0x4] sm:$0x7]
    %v453 = vld [vmem:[%s12 + $0x8] sm:$0x7]
    %v454 = vld [vmem:[%s12 + $0xc] sm:$0x7]
    %v455 = vld [vmem:[%s13] sm:$0xff]
    %v456 = vld [vmem:[%s13 + $0x8] sm:$0xff]
    %v457 = vld [vmem:[%s13 + $0x10] sm:$0xff]
    %v458 = vld [vmem:[%s13 + $0x18] sm:$0xff]
    %v459 = vld [vmem:[%s14] sm:$0xff]
    %v460 = vld [vmem:[%s14 + $0x8] sm:$0xff]
    %v461 = vld [vmem:[%s14 + $0x10] sm:$0xff]
    %v462 = vld [vmem:[%s14 + $0x18] sm:$0xff]
    %v463 = vld [vmem:[%s15] sm:$0xff]
    %v464 = vld [vmem:[%s15 + $0x8] sm:$0xff]
    %v465 = vld [vmem:[%s15 + $0x10] sm:$0xff]
    %v466 = vld [vmem:[%s15 + $0x18] sm:$0xff]
    %v467 = vld [vmem:[%s16] sm:$0xff]
    %v468 = vld [vmem:[%s16 + $0x8] sm:$0xff]
    %v469 = vld [vmem:[%s16 + $0x10] sm:$0xff]
    %v470 = vld [vmem:[%s16 + $0x18] sm:$0xff]
    %v473 = vcombine.high %v444, %v444
    %v475 = vunpack.c.l.s4 1966171168
    %v476 = vunpack.c.0.s8 %v475
    %v477 = vlaneseq
    %v478 = vshrl.u32 %v477, 7
    %v479 = vsub.s32 %v476, %v478
    %v480 = vrot.slane %v444, %v479
    %v482 = vunpack.c.l.s4 1966171168
    %v483 = vunpack.c.0.s8 %v482
    %v484 = vlaneseq
    %v485 = vshrl.u32 %v484, 7
    %v486 = vsub.s32 %v483, %v485
    %v487 = vrot.slane %v473, %v486
    %v488 = vcombine.high %v480, %v480
    %v489 = vcombine.high %v487, %v487
    %v491 = vunpack.c.l.s4 1966171168
    %v492 = vunpack.c.0.s8 %v491
    %v493 = vlaneseq
    %v494 = vshrl.u32 %v493, 7
    %v495 = vsub.s32 %v492, %v494
    %v496 = vrot.slane %v480, %v495
    %v498 = vunpack.c.l.s4 1966171168
    %v499 = vunpack.c.0.s8 %v498
    %v500 = vlaneseq
    %v501 = vshrl.u32 %v500, 7
    %v502 = vsub.s32 %v499, %v501
    %v503 = vrot.slane %v487, %v502
    %v505 = vunpack.c.l.s4 1966171168
    %v506 = vunpack.c.0.s8 %v505
    %v507 = vlaneseq
    %v508 = vshrl.u32 %v507, 7
    %v509 = vsub.s32 %v506, %v508
    %v510 = vrot.slane %v488, %v509
    %v512 = vunpack.c.l.s4 1966171168
    %v513 = vunpack.c.0.s8 %v512
    %v514 = vlaneseq
    %v515 = vshrl.u32 %v514, 7
    %v516 = vsub.s32 %v513, %v515
    %v517 = vrot.slane %v489, %v516
    %v518 = vcombine.high %v496, %v496
    %v519 = vcombine.high %v503, %v503
    %v520 = vcombine.high %v510, %v510
    %v521 = vcombine.high %v517, %v517
    %v522 = vcombine.high %v446, %v446
    %v524 = vunpack.c.l.s4 1966171168
    %v525 = vunpack.c.0.s8 %v524
    %v526 = vlaneseq
    %v527 = vshrl.u32 %v526, 7
    %v528 = vsub.s32 %v525, %v527
    %v529 = vrot.slane %v446, %v528
    %v531 = vunpack.c.l.s4 1966171168
    %v532 = vunpack.c.0.s8 %v531
    %v533 = vlaneseq
    %v534 = vshrl.u32 %v533, 7
    %v535 = vsub.s32 %v532, %v534
    %v536 = vrot.slane %v522, %v535
    %v537 = vcombine.high %v529, %v529
    %v538 = vcombine.high %v536, %v536
    %v540 = vunpack.c.l.s4 1966171168
    %v541 = vunpack.c.0.s8 %v540
    %v542 = vlaneseq
    %v543 = vshrl.u32 %v542, 7
    %v544 = vsub.s32 %v541, %v543
    %v545 = vrot.slane %v529, %v544
    %v547 = vunpack.c.l.s4 1966171168
    %v548 = vunpack.c.0.s8 %v547
    %v549 = vlaneseq
    %v550 = vshrl.u32 %v549, 7
    %v551 = vsub.s32 %v548, %v550
    %v552 = vrot.slane %v536, %v551
    %v554 = vunpack.c.l.s4 1966171168
    %v555 = vunpack.c.0.s8 %v554
    %v556 = vlaneseq
    %v557 = vshrl.u32 %v556, 7
    %v558 = vsub.s32 %v555, %v557
    %v559 = vrot.slane %v537, %v558
    %v561 = vunpack.c.l.s4 1966171168
    %v562 = vunpack.c.0.s8 %v561
    %v563 = vlaneseq
    %v564 = vshrl.u32 %v563, 7
    %v565 = vsub.s32 %v562, %v564
    %v566 = vrot.slane %v538, %v565
    %v567 = vcombine.high %v545, %v545
    %v568 = vcombine.high %v552, %v552
    %v569 = vcombine.high %v559, %v559
    %v570 = vcombine.high %v566, %v566
    %v571 = vlaneseq
    %v572 = vshrl.u32 %v571, 7
    %v573 = vsub.s32 0, %v572
    %v574 = vrot.slane %v447, %v573
    %576 = vbcast.lane.b32.xlu0 %v574, 256
    %v577 = vpop.permute.xlu0 %576
    %v578 = vlaneseq
    %v579 = vshrl.u32 %v578, 7
    %v580 = vsub.s32 1, %v579
    %v581 = vrot.slane %v447, %v580
    %583 = vbcast.lane.b32.xlu0 %v581, 256
    %v584 = vpop.permute.xlu0 %583
    %v585 = vlaneseq
    %v586 = vshrl.u32 %v585, 7
    %v587 = vsub.s32 2, %v586
    %v588 = vrot.slane %v447, %v587
    %590 = vbcast.lane.b32.xlu0 %v588, 256
    %v591 = vpop.permute.xlu0 %590
    %v592 = vlaneseq
    %v593 = vshrl.u32 %v592, 7
    %v594 = vsub.s32 3, %v593
    %v595 = vrot.slane %v447, %v594
    %597 = vbcast.lane.b32.xlu0 %v595, 256
    %v598 = vpop.permute.xlu0 %597
    %v599 = vlaneseq
    %v600 = vshrl.u32 %v599, 7
    %v601 = vsub.s32 4, %v600
    %v602 = vrot.slane %v447, %v601
    %604 = vbcast.lane.b32.xlu0 %v602, 256
    %v605 = vpop.permute.xlu0 %604
    %v606 = vlaneseq
    %v607 = vshrl.u32 %v606, 7
    %v608 = vsub.s32 5, %v607
    %v609 = vrot.slane %v447, %v608
    %611 = vbcast.lane.b32.xlu0 %v609, 256
    %v612 = vpop.permute.xlu0 %611
    %v613 = vlaneseq
    %v614 = vshrl.u32 %v613, 7
    %v615 = vsub.s32 6, %v614
    %v616 = vrot.slane %v447, %v615
    %618 = vbcast.lane.b32.xlu0 %v616, 256
    %v619 = vpop.permute.xlu0 %618
    %v620 = vlaneseq
    %v621 = vshrl.u32 %v620, 7
    %v622 = vsub.s32 7, %v621
    %v623 = vrot.slane %v447, %v622
    %625 = vbcast.lane.b32.xlu0 %v623, 256
    %v626 = vpop.permute.xlu0 %625
    %v627 = vlaneseq
    %v628 = vshrl.u32 %v627, 7
    %v629 = vsub.s32 0, %v628
    %v630 = vrot.slane %v496, %v629
    %v631 = vlaneseq
    %v632 = vshrl.u32 %v631, 7
    %v633 = vsub.s32 0, %v632
    %v634 = vrot.slane %v510, %v633
    %v635 = vlaneseq
    %v636 = vshrl.u32 %v635, 7
    %v637 = vsub.s32 0, %v636
    %v638 = vrot.slane %v518, %v637
    %v639 = vlaneseq
    %v640 = vshrl.u32 %v639, 7
    %v641 = vsub.s32 0, %v640
    %v642 = vrot.slane %v520, %v641
    %v643 = vlaneseq
    %v644 = vshrl.u32 %v643, 7
    %v645 = vsub.s32 0, %v644
    %v646 = vrot.slane %v503, %v645
    %v647 = vlaneseq
    %v648 = vshrl.u32 %v647, 7
    %v649 = vsub.s32 0, %v648
    %v650 = vrot.slane %v517, %v649
    %v651 = vlaneseq
    %v652 = vshrl.u32 %v651, 7
    %v653 = vsub.s32 0, %v652
    %v654 = vrot.slane %v519, %v653
    %v655 = vlaneseq
    %v656 = vshrl.u32 %v655, 7
    %v657 = vsub.s32 0, %v656
    %v658 = vrot.slane %v521, %v657
    %v659 = vlaneseq
    %v660 = vshrl.u32 %v659, 7
    %v661 = vsub.s32 0, %v660
    %v662 = vrot.slane %v545, %v661
    %v663 = vlaneseq
    %v664 = vshrl.u32 %v663, 7
    %v665 = vsub.s32 0, %v664
    %v666 = vrot.slane %v559, %v665
    %v667 = vlaneseq
    %v668 = vshrl.u32 %v667, 7
    %v669 = vsub.s32 0, %v668
    %v670 = vrot.slane %v567, %v669
    %v671 = vlaneseq
    %v672 = vshrl.u32 %v671, 7
    %v673 = vsub.s32 0, %v672
    %v674 = vrot.slane %v569, %v673
    %v675 = vlaneseq
    %v676 = vshrl.u32 %v675, 7
    %v677 = vsub.s32 0, %v676
    %v678 = vrot.slane %v552, %v677
    %v679 = vlaneseq
    %v680 = vshrl.u32 %v679, 7
    %v681 = vsub.s32 0, %v680
    %v682 = vrot.slane %v566, %v681
    %v683 = vlaneseq
    %v684 = vshrl.u32 %v683, 7
    %v685 = vsub.s32 0, %v684
    %v686 = vrot.slane %v568, %v685
    %v687 = vlaneseq
    %v688 = vshrl.u32 %v687, 7
    %v689 = vsub.s32 0, %v688
    %v690 = vrot.slane %v570, %v689
    %v707 = vmul.f32 %v630, %v577
    %v708 = vmul.f32 %v634, %v584
    %v709 = vmul.f32 %v638, %v591
    %v710 = vmul.f32 %v642, %v598
    %v711 = vmul.f32 %v646, %v605
    %v712 = vmul.f32 %v650, %v612
    %v713 = vmul.f32 %v654, %v619
    %v714 = vmul.f32 %v658, %v626
    %v715 = vmul.f32 %v662, %v577
    %v716 = vmul.f32 %v666, %v584
    %v717 = vmul.f32 %v670, %v591
    %v718 = vmul.f32 %v674, %v598
    %v719 = vmul.f32 %v678, %v605
    %v720 = vmul.f32 %v682, %v612
    %v721 = vmul.f32 %v686, %v619
    %v722 = vmul.f32 %v690, %v626
    %vm723 = vcmask 256000
    %v724 = vsel %vm723, %v707, 0.0
    %v725 = vsel %vm723, %v708, 0.0
    %v726 = vadd.f32 %v724, %v725
    %v727 = vsel %vm723, %v709, 0.0
    %v728 = vadd.f32 %v726, %v727
    %v729 = vsel %vm723, %v710, 0.0
    %v730 = vadd.f32 %v728, %v729
    %v731 = vsel %vm723, %v711, 0.0
    %v732 = vadd.f32 %v730, %v731
    %v733 = vsel %vm723, %v712, 0.0
    %v734 = vadd.f32 %v732, %v733
    %v735 = vsel %vm723, %v713, 0.0
    %v736 = vadd.f32 %v734, %v735
    %v737 = vsel %vm723, %v714, 0.0
    %v738 = vadd.f32 %v736, %v737
    %v739 = vsel %vm723, %v715, 0.0
    %v740 = vsel %vm723, %v716, 0.0
    %v741 = vadd.f32 %v739, %v740
    %v742 = vsel %vm723, %v717, 0.0
    %v743 = vadd.f32 %v741, %v742
    %v744 = vsel %vm723, %v718, 0.0
    %v745 = vadd.f32 %v743, %v744
    %v746 = vsel %vm723, %v719, 0.0
    %v747 = vadd.f32 %v745, %v746
    %v748 = vsel %vm723, %v720, 0.0
    %v749 = vadd.f32 %v747, %v748
    %v750 = vsel %vm723, %v721, 0.0
    %v751 = vadd.f32 %v749, %v750
    %v752 = vsel %vm723, %v722, 0.0
    %v753 = vadd.f32 %v751, %v752
    %755 = vset.pattern.permute.xlu0 0
    %756 = vperm.xlu0 %755, %v451
    %v757 = vpop.permute.xlu0 %756
    %v759 = vadd.f32 %v738, %v757
    %v760 = vadd.f32 %v753, %v757
    %v763 = vrot.slane %v759, 6
    %v764 = vrot.slane %v760, 6
    %v767 = vmul.f32 %v759, %v763
    %v768 = vmul.f32 %v760, %v764
    %v771 = vrot.slane %v768, 7
    %vm772 = vcmask 1043459
    %v773 = vsel %vm772, %v771, %v767
    %vm775 = vcmask 257026
    %v776 = vsel %vm775, %v773, 0.0
    %777 = vadd.xlane.f32.xlu0 %v776
    %v778 = vpop.xlane.xlu0 %777
    %v779 = vmul.f32 %v778, 0.03125
    %v781 = vrot.slane %v779, 1
    %v782 = vrot.slane %v779, 2
    %v785 = vmul.f32 %v759, %v781
    %v786 = vmul.f32 %v760, %v782
    %v787 = vlaneseq
    %v788 = vshrl.u32 %v787, 7
    %v789 = vsub.s32 1, %v788
    %v790 = vrot.slane %v785, %v789
    %v791 = vlaneseq
    %v792 = vshrl.u32 %v791, 7
    %v793 = vsub.s32 1, %v792
    %v794 = vrot.slane %v786, %v793
    %796 = vset.pattern.permute.xlu0 0
    %797 = vperm.xlu0 %796, %v455
    %v798 = vpop.permute.xlu0 %797
    %v800 = vmul.f32 %v790, %v798
    %v801 = vmul.f32 %v794, %v798
    %803 = vset.pattern.permute.xlu0 0
    %804 = vperm.xlu0 %803, %v459
    %v805 = vpop.permute.xlu0 %804
    %v807 = vadd.f32 %v800, %v805
    %v808 = vadd.f32 %v801, %v805
    %v809 = vsel %vm305, %v807, 0.0
    %v810 = vsel %vm305, %v808, 0.0
    %v811 = vadd.f32 %v809, %v810
    %812 = vadd.xlane.f32.xlu0 %v811
    %v813 = vpop.xlane.xlu0 %812
    %v814 = vmul.f32 %v813, %v311
    %v815 = vsub.f32 %v807, %v814
    %v816 = vsub.f32 %v808, %v814
    %v817 = vmul.f32 %v815, %v815
    %v818 = vmul.f32 %v816, %v816
    %v819 = vsel %vm305, %v817, 0.0
    %v820 = vsel %vm305, %v818, 0.0
    %v821 = vadd.f32 %v819, %v820
    %822 = vadd.xlane.f32.xlu0 %v821
    %v823 = vpop.xlane.xlu0 %822
    %v824 = vmul.f32 %v823, %v311
    %v825 = vadd.f32 %v824, 1e-05
    %v826 = vrsqrt.pop %v825
    %v827 = vmul.f32 %v815, %v826
    %v828 = vmul.f32 %v816, %v826
    %830 = vset.pattern.permute.xlu0 0
    %831 = vperm.xlu0 %830, %v463
    %v832 = vpop.permute.xlu0 %831
    %v834 = vmul.f32 %v827, %v832
    %v835 = vmul.f32 %v828, %v832
    %837 = vset.pattern.permute.xlu0 0
    %838 = vperm.xlu0 %837, %v467
    %v839 = vpop.permute.xlu0 %838
    %v841 = vadd.f32 %v834, %v839
    %v842 = vadd.f32 %v835, %v839
    %v843 = vadd.f32 %v841, %v444
    %v844 = vadd.f32 %v842, %v446
    %v847 = vcombine.high %v843, %v843
    %v849 = vunpack.c.l.s4 1966171168
    %v850 = vunpack.c.0.s8 %v849
    %v851 = vlaneseq
    %v852 = vshrl.u32 %v851, 7
    %v853 = vsub.s32 %v850, %v852
    %v854 = vrot.slane %v843, %v853
    %v856 = vunpack.c.l.s4 1966171168
    %v857 = vunpack.c.0.s8 %v856
    %v858 = vlaneseq
    %v859 = vshrl.u32 %v858, 7
    %v860 = vsub.s32 %v857, %v859
    %v861 = vrot.slane %v847, %v860
    %v862 = vcombine.high %v854, %v854
    %v863 = vcombine.high %v861, %v861
    %v865 = vunpack.c.l.s4 1966171168
    %v866 = vunpack.c.0.s8 %v865
    %v867 = vlaneseq
    %v868 = vshrl.u32 %v867, 7
    %v869 = vsub.s32 %v866, %v868
    %v870 = vrot.slane %v854, %v869
    %v872 = vunpack.c.l.s4 1966171168
    %v873 = vunpack.c.0.s8 %v872
    %v874 = vlaneseq
    %v875 = vshrl.u32 %v874, 7
    %v876 = vsub.s32 %v873, %v875
    %v877 = vrot.slane %v861, %v876
    %v879 = vunpack.c.l.s4 1966171168
    %v880 = vunpack.c.0.s8 %v879
    %v881 = vlaneseq
    %v882 = vshrl.u32 %v881, 7
    %v883 = vsub.s32 %v880, %v882
    %v884 = vrot.slane %v862, %v883
    %v886 = vunpack.c.l.s4 1966171168
    %v887 = vunpack.c.0.s8 %v886
    %v888 = vlaneseq
    %v889 = vshrl.u32 %v888, 7
    %v890 = vsub.s32 %v887, %v889
    %v891 = vrot.slane %v863, %v890
    %v892 = vcombine.high %v870, %v870
    %v893 = vcombine.high %v877, %v877
    %v894 = vcombine.high %v884, %v884
    %v895 = vcombine.high %v891, %v891
    %v896 = vcombine.high %v844, %v844
    %v898 = vunpack.c.l.s4 1966171168
    %v899 = vunpack.c.0.s8 %v898
    %v900 = vlaneseq
    %v901 = vshrl.u32 %v900, 7
    %v902 = vsub.s32 %v899, %v901
    %v903 = vrot.slane %v844, %v902
    %v905 = vunpack.c.l.s4 1966171168
    %v906 = vunpack.c.0.s8 %v905
    %v907 = vlaneseq
    %v908 = vshrl.u32 %v907, 7
    %v909 = vsub.s32 %v906, %v908
    %v910 = vrot.slane %v896, %v909
    %v911 = vcombine.high %v903, %v903
    %v912 = vcombine.high %v910, %v910
    %v914 = vunpack.c.l.s4 1966171168
    %v915 = vunpack.c.0.s8 %v914
    %v916 = vlaneseq
    %v917 = vshrl.u32 %v916, 7
    %v918 = vsub.s32 %v915, %v917
    %v919 = vrot.slane %v903, %v918
    %v921 = vunpack.c.l.s4 1966171168
    %v922 = vunpack.c.0.s8 %v921
    %v923 = vlaneseq
    %v924 = vshrl.u32 %v923, 7
    %v925 = vsub.s32 %v922, %v924
    %v926 = vrot.slane %v910, %v925
    %v928 = vunpack.c.l.s4 1966171168
    %v929 = vunpack.c.0.s8 %v928
    %v930 = vlaneseq
    %v931 = vshrl.u32 %v930, 7
    %v932 = vsub.s32 %v929, %v931
    %v933 = vrot.slane %v911, %v932
    %v935 = vunpack.c.l.s4 1966171168
    %v936 = vunpack.c.0.s8 %v935
    %v937 = vlaneseq
    %v938 = vshrl.u32 %v937, 7
    %v939 = vsub.s32 %v936, %v938
    %v940 = vrot.slane %v912, %v939
    %v941 = vcombine.high %v919, %v919
    %v942 = vcombine.high %v926, %v926
    %v943 = vcombine.high %v933, %v933
    %v944 = vcombine.high %v940, %v940
    %v945 = vlaneseq
    %v946 = vshrl.u32 %v945, 7
    %v947 = vsub.s32 0, %v946
    %v948 = vrot.slane %v448, %v947
    %950 = vbcast.lane.b32.xlu0 %v948, 256
    %v951 = vpop.permute.xlu0 %950
    %v952 = vlaneseq
    %v953 = vshrl.u32 %v952, 7
    %v954 = vsub.s32 1, %v953
    %v955 = vrot.slane %v448, %v954
    %957 = vbcast.lane.b32.xlu0 %v955, 256
    %v958 = vpop.permute.xlu0 %957
    %v959 = vlaneseq
    %v960 = vshrl.u32 %v959, 7
    %v961 = vsub.s32 2, %v960
    %v962 = vrot.slane %v448, %v961
    %964 = vbcast.lane.b32.xlu0 %v962, 256
    %v965 = vpop.permute.xlu0 %964
    %v966 = vlaneseq
    %v967 = vshrl.u32 %v966, 7
    %v968 = vsub.s32 3, %v967
    %v969 = vrot.slane %v448, %v968
    %971 = vbcast.lane.b32.xlu0 %v969, 256
    %v972 = vpop.permute.xlu0 %971
    %v973 = vlaneseq
    %v974 = vshrl.u32 %v973, 7
    %v975 = vsub.s32 4, %v974
    %v976 = vrot.slane %v448, %v975
    %978 = vbcast.lane.b32.xlu0 %v976, 256
    %v979 = vpop.permute.xlu0 %978
    %v980 = vlaneseq
    %v981 = vshrl.u32 %v980, 7
    %v982 = vsub.s32 5, %v981
    %v983 = vrot.slane %v448, %v982
    %985 = vbcast.lane.b32.xlu0 %v983, 256
    %v986 = vpop.permute.xlu0 %985
    %v987 = vlaneseq
    %v988 = vshrl.u32 %v987, 7
    %v989 = vsub.s32 6, %v988
    %v990 = vrot.slane %v448, %v989
    %992 = vbcast.lane.b32.xlu0 %v990, 256
    %v993 = vpop.permute.xlu0 %992
    %v994 = vlaneseq
    %v995 = vshrl.u32 %v994, 7
    %v996 = vsub.s32 7, %v995
    %v997 = vrot.slane %v448, %v996
    %999 = vbcast.lane.b32.xlu0 %v997, 256
    %v1000 = vpop.permute.xlu0 %999
    %v1001 = vlaneseq
    %v1002 = vshrl.u32 %v1001, 7
    %v1003 = vsub.s32 0, %v1002
    %v1004 = vrot.slane %v870, %v1003
    %v1005 = vlaneseq
    %v1006 = vshrl.u32 %v1005, 7
    %v1007 = vsub.s32 0, %v1006
    %v1008 = vrot.slane %v884, %v1007
    %v1009 = vlaneseq
    %v1010 = vshrl.u32 %v1009, 7
    %v1011 = vsub.s32 0, %v1010
    %v1012 = vrot.slane %v892, %v1011
    %v1013 = vlaneseq
    %v1014 = vshrl.u32 %v1013, 7
    %v1015 = vsub.s32 0, %v1014
    %v1016 = vrot.slane %v894, %v1015
    %v1017 = vlaneseq
    %v1018 = vshrl.u32 %v1017, 7
    %v1019 = vsub.s32 0, %v1018
    %v1020 = vrot.slane %v877, %v1019
    %v1021 = vlaneseq
    %v1022 = vshrl.u32 %v1021, 7
    %v1023 = vsub.s32 0, %v1022
    %v1024 = vrot.slane %v891, %v1023
    %v1025 = vlaneseq
    %v1026 = vshrl.u32 %v1025, 7
    %v1027 = vsub.s32 0, %v1026
    %v1028 = vrot.slane %v893, %v1027
    %v1029 = vlaneseq
    %v1030 = vshrl.u32 %v1029, 7
    %v1031 = vsub.s32 0, %v1030
    %v1032 = vrot.slane %v895, %v1031
    %v1033 = vlaneseq
    %v1034 = vshrl.u32 %v1033, 7
    %v1035 = vsub.s32 0, %v1034
    %v1036 = vrot.slane %v919, %v1035
    %v1037 = vlaneseq
    %v1038 = vshrl.u32 %v1037, 7
    %v1039 = vsub.s32 0, %v1038
    %v1040 = vrot.slane %v933, %v1039
    %v1041 = vlaneseq
    %v1042 = vshrl.u32 %v1041, 7
    %v1043 = vsub.s32 0, %v1042
    %v1044 = vrot.slane %v941, %v1043
    %v1045 = vlaneseq
    %v1046 = vshrl.u32 %v1045, 7
    %v1047 = vsub.s32 0, %v1046
    %v1048 = vrot.slane %v943, %v1047
    %v1049 = vlaneseq
    %v1050 = vshrl.u32 %v1049, 7
    %v1051 = vsub.s32 0, %v1050
    %v1052 = vrot.slane %v926, %v1051
    %v1053 = vlaneseq
    %v1054 = vshrl.u32 %v1053, 7
    %v1055 = vsub.s32 0, %v1054
    %v1056 = vrot.slane %v940, %v1055
    %v1057 = vlaneseq
    %v1058 = vshrl.u32 %v1057, 7
    %v1059 = vsub.s32 0, %v1058
    %v1060 = vrot.slane %v942, %v1059
    %v1061 = vlaneseq
    %v1062 = vshrl.u32 %v1061, 7
    %v1063 = vsub.s32 0, %v1062
    %v1064 = vrot.slane %v944, %v1063
    %v1081 = vmul.f32 %v1004, %v951
    %v1082 = vmul.f32 %v1008, %v958
    %v1083 = vmul.f32 %v1012, %v965
    %v1084 = vmul.f32 %v1016, %v972
    %v1085 = vmul.f32 %v1020, %v979
    %v1086 = vmul.f32 %v1024, %v986
    %v1087 = vmul.f32 %v1028, %v993
    %v1088 = vmul.f32 %v1032, %v1000
    %v1089 = vmul.f32 %v1036, %v951
    %v1090 = vmul.f32 %v1040, %v958
    %v1091 = vmul.f32 %v1044, %v965
    %v1092 = vmul.f32 %v1048, %v972
    %v1093 = vmul.f32 %v1052, %v979
    %v1094 = vmul.f32 %v1056, %v986
    %v1095 = vmul.f32 %v1060, %v993
    %v1096 = vmul.f32 %v1064, %v1000
    %v1097 = vsel %vm723, %v1081, 0.0
    %v1098 = vsel %vm723, %v1082, 0.0
    %v1099 = vadd.f32 %v1097, %v1098
    %v1100 = vsel %vm723, %v1083, 0.0
    %v1101 = vadd.f32 %v1099, %v1100
    %v1102 = vsel %vm723, %v1084, 0.0
    %v1103 = vadd.f32 %v1101, %v1102
    %v1104 = vsel %vm723, %v1085, 0.0
    %v1105 = vadd.f32 %v1103, %v1104
    %v1106 = vsel %vm723, %v1086, 0.0
    %v1107 = vadd.f32 %v1105, %v1106
    %v1108 = vsel %vm723, %v1087, 0.0
    %v1109 = vadd.f32 %v1107, %v1108
    %v1110 = vsel %vm723, %v1088, 0.0
    %v1111 = vadd.f32 %v1109, %v1110
    %v1112 = vsel %vm723, %v1089, 0.0
    %v1113 = vsel %vm723, %v1090, 0.0
    %v1114 = vadd.f32 %v1112, %v1113
    %v1115 = vsel %vm723, %v1091, 0.0
    %v1116 = vadd.f32 %v1114, %v1115
    %v1117 = vsel %vm723, %v1092, 0.0
    %v1118 = vadd.f32 %v1116, %v1117
    %v1119 = vsel %vm723, %v1093, 0.0
    %v1120 = vadd.f32 %v1118, %v1119
    %v1121 = vsel %vm723, %v1094, 0.0
    %v1122 = vadd.f32 %v1120, %v1121
    %v1123 = vsel %vm723, %v1095, 0.0
    %v1124 = vadd.f32 %v1122, %v1123
    %v1125 = vsel %vm723, %v1096, 0.0
    %v1126 = vadd.f32 %v1124, %v1125
    %1128 = vset.pattern.permute.xlu0 0
    %1129 = vperm.xlu0 %1128, %v452
    %v1130 = vpop.permute.xlu0 %1129
    %v1132 = vadd.f32 %v1111, %v1130
    %v1133 = vadd.f32 %v1126, %v1130
    %v1136 = vrot.slane %v1132, 6
    %v1137 = vrot.slane %v1133, 6
    %v1140 = vmul.f32 %v1132, %v1136
    %v1141 = vmul.f32 %v1133, %v1137
    %v1144 = vrot.slane %v1141, 7
    %v1145 = vsel %vm772, %v1144, %v1140
    %v1147 = vsel %vm775, %v1145, 0.0
    %1148 = vadd.xlane.f32.xlu0 %v1147
    %v1149 = vpop.xlane.xlu0 %1148
    %v1150 = vmul.f32 %v1149, 0.03125
    %v1152 = vrot.slane %v1150, 1
    %v1153 = vrot.slane %v1150, 2
    %v1156 = vmul.f32 %v1132, %v1152
    %v1157 = vmul.f32 %v1133, %v1153
    %v1158 = vlaneseq
    %v1159 = vshrl.u32 %v1158, 7
    %v1160 = vsub.s32 1, %v1159
    %v1161 = vrot.slane %v1156, %v1160
    %v1162 = vlaneseq
    %v1163 = vshrl.u32 %v1162, 7
    %v1164 = vsub.s32 1, %v1163
    %v1165 = vrot.slane %v1157, %v1164
    %1167 = vset.pattern.permute.xlu0 0
    %1168 = vperm.xlu0 %1167, %v456
    %v1169 = vpop.permute.xlu0 %1168
    %v1171 = vmul.f32 %v1161, %v1169
    %v1172 = vmul.f32 %v1165, %v1169
    %1174 = vset.pattern.permute.xlu0 0
    %1175 = vperm.xlu0 %1174, %v460
    %v1176 = vpop.permute.xlu0 %1175
    %v1178 = vadd.f32 %v1171, %v1176
    %v1179 = vadd.f32 %v1172, %v1176
    %v1180 = vsel %vm305, %v1178, 0.0
    %v1181 = vsel %vm305, %v1179, 0.0
    %v1182 = vadd.f32 %v1180, %v1181
    %1183 = vadd.xlane.f32.xlu0 %v1182
    %v1184 = vpop.xlane.xlu0 %1183
    %v1185 = vmul.f32 %v1184, %v311
    %v1186 = vsub.f32 %v1178, %v1185
    %v1187 = vsub.f32 %v1179, %v1185
    %v1188 = vmul.f32 %v1186, %v1186
    %v1189 = vmul.f32 %v1187, %v1187
    %v1190 = vsel %vm305, %v1188, 0.0
    %v1191 = vsel %vm305, %v1189, 0.0
    %v1192 = vadd.f32 %v1190, %v1191
    %1193 = vadd.xlane.f32.xlu0 %v1192
    %v1194 = vpop.xlane.xlu0 %1193
    %v1195 = vmul.f32 %v1194, %v311
    %v1196 = vadd.f32 %v1195, 1e-05
    %v1197 = vrsqrt.pop %v1196
    %v1198 = vmul.f32 %v1186, %v1197
    %v1199 = vmul.f32 %v1187, %v1197
    %1201 = vset.pattern.permute.xlu0 0
    %1202 = vperm.xlu0 %1201, %v464
    %v1203 = vpop.permute.xlu0 %1202
    %v1205 = vmul.f32 %v1198, %v1203
    %v1206 = vmul.f32 %v1199, %v1203
    %1208 = vset.pattern.permute.xlu0 0
    %1209 = vperm.xlu0 %1208, %v468
    %v1210 = vpop.permute.xlu0 %1209
    %v1212 = vadd.f32 %v1205, %v1210
    %v1213 = vadd.f32 %v1206, %v1210
    %v1214 = vadd.f32 %v1212, %v843
    %v1215 = vadd.f32 %v1213, %v844
    %v1218 = vcombine.high %v1214, %v1214
    %v1220 = vunpack.c.l.s4 1966171168
    %v1221 = vunpack.c.0.s8 %v1220
    %v1222 = vlaneseq
    %v1223 = vshrl.u32 %v1222, 7
    %v1224 = vsub.s32 %v1221, %v1223
    %v1225 = vrot.slane %v1214, %v1224
    %v1227 = vunpack.c.l.s4 1966171168
    %v1228 = vunpack.c.0.s8 %v1227
    %v1229 = vlaneseq
    %v1230 = vshrl.u32 %v1229, 7
    %v1231 = vsub.s32 %v1228, %v1230
    %v1232 = vrot.slane %v1218, %v1231
    %v1233 = vcombine.high %v1225, %v1225
    %v1234 = vcombine.high %v1232, %v1232
    %v1236 = vunpack.c.l.s4 1966171168
    %v1237 = vunpack.c.0.s8 %v1236
    %v1238 = vlaneseq
    %v1239 = vshrl.u32 %v1238, 7
    %v1240 = vsub.s32 %v1237, %v1239
    %v1241 = vrot.slane %v1225, %v1240
    %v1243 = vunpack.c.l.s4 1966171168
    %v1244 = vunpack.c.0.s8 %v1243
    %v1245 = vlaneseq
    %v1246 = vshrl.u32 %v1245, 7
    %v1247 = vsub.s32 %v1244, %v1246
    %v1248 = vrot.slane %v1232, %v1247
    %v1250 = vunpack.c.l.s4 1966171168
    %v1251 = vunpack.c.0.s8 %v1250
    %v1252 = vlaneseq
    %v1253 = vshrl.u32 %v1252, 7
    %v1254 = vsub.s32 %v1251, %v1253
    %v1255 = vrot.slane %v1233, %v1254
    %v1257 = vunpack.c.l.s4 1966171168
    %v1258 = vunpack.c.0.s8 %v1257
    %v1259 = vlaneseq
    %v1260 = vshrl.u32 %v1259, 7
    %v1261 = vsub.s32 %v1258, %v1260
    %v1262 = vrot.slane %v1234, %v1261
    %v1263 = vcombine.high %v1241, %v1241
    %v1264 = vcombine.high %v1248, %v1248
    %v1265 = vcombine.high %v1255, %v1255
    %v1266 = vcombine.high %v1262, %v1262
    %v1267 = vcombine.high %v1215, %v1215
    %v1269 = vunpack.c.l.s4 1966171168
    %v1270 = vunpack.c.0.s8 %v1269
    %v1271 = vlaneseq
    %v1272 = vshrl.u32 %v1271, 7
    %v1273 = vsub.s32 %v1270, %v1272
    %v1274 = vrot.slane %v1215, %v1273
    %v1276 = vunpack.c.l.s4 1966171168
    %v1277 = vunpack.c.0.s8 %v1276
    %v1278 = vlaneseq
    %v1279 = vshrl.u32 %v1278, 7
    %v1280 = vsub.s32 %v1277, %v1279
    %v1281 = vrot.slane %v1267, %v1280
    %v1282 = vcombine.high %v1274, %v1274
    %v1283 = vcombine.high %v1281, %v1281
    %v1285 = vunpack.c.l.s4 1966171168
    %v1286 = vunpack.c.0.s8 %v1285
    %v1287 = vlaneseq
    %v1288 = vshrl.u32 %v1287, 7
    %v1289 = vsub.s32 %v1286, %v1288
    %v1290 = vrot.slane %v1274, %v1289
    %v1292 = vunpack.c.l.s4 1966171168
    %v1293 = vunpack.c.0.s8 %v1292
    %v1294 = vlaneseq
    %v1295 = vshrl.u32 %v1294, 7
    %v1296 = vsub.s32 %v1293, %v1295
    %v1297 = vrot.slane %v1281, %v1296
    %v1299 = vunpack.c.l.s4 1966171168
    %v1300 = vunpack.c.0.s8 %v1299
    %v1301 = vlaneseq
    %v1302 = vshrl.u32 %v1301, 7
    %v1303 = vsub.s32 %v1300, %v1302
    %v1304 = vrot.slane %v1282, %v1303
    %v1306 = vunpack.c.l.s4 1966171168
    %v1307 = vunpack.c.0.s8 %v1306
    %v1308 = vlaneseq
    %v1309 = vshrl.u32 %v1308, 7
    %v1310 = vsub.s32 %v1307, %v1309
    %v1311 = vrot.slane %v1283, %v1310
    %v1312 = vcombine.high %v1290, %v1290
    %v1313 = vcombine.high %v1297, %v1297
    %v1314 = vcombine.high %v1304, %v1304
    %v1315 = vcombine.high %v1311, %v1311
    %v1316 = vlaneseq
    %v1317 = vshrl.u32 %v1316, 7
    %v1318 = vsub.s32 0, %v1317
    %v1319 = vrot.slane %v449, %v1318
    %1321 = vbcast.lane.b32.xlu0 %v1319, 256
    %v1322 = vpop.permute.xlu0 %1321
    %v1323 = vlaneseq
    %v1324 = vshrl.u32 %v1323, 7
    %v1325 = vsub.s32 1, %v1324
    %v1326 = vrot.slane %v449, %v1325
    %1328 = vbcast.lane.b32.xlu0 %v1326, 256
    %v1329 = vpop.permute.xlu0 %1328
    %v1330 = vlaneseq
    %v1331 = vshrl.u32 %v1330, 7
    %v1332 = vsub.s32 2, %v1331
    %v1333 = vrot.slane %v449, %v1332
    %1335 = vbcast.lane.b32.xlu0 %v1333, 256
    %v1336 = vpop.permute.xlu0 %1335
    %v1337 = vlaneseq
    %v1338 = vshrl.u32 %v1337, 7
    %v1339 = vsub.s32 3, %v1338
    %v1340 = vrot.slane %v449, %v1339
    %1342 = vbcast.lane.b32.xlu0 %v1340, 256
    %v1343 = vpop.permute.xlu0 %1342
    %v1344 = vlaneseq
    %v1345 = vshrl.u32 %v1344, 7
    %v1346 = vsub.s32 4, %v1345
    %v1347 = vrot.slane %v449, %v1346
    %1349 = vbcast.lane.b32.xlu0 %v1347, 256
    %v1350 = vpop.permute.xlu0 %1349
    %v1351 = vlaneseq
    %v1352 = vshrl.u32 %v1351, 7
    %v1353 = vsub.s32 5, %v1352
    %v1354 = vrot.slane %v449, %v1353
    %1356 = vbcast.lane.b32.xlu0 %v1354, 256
    %v1357 = vpop.permute.xlu0 %1356
    %v1358 = vlaneseq
    %v1359 = vshrl.u32 %v1358, 7
    %v1360 = vsub.s32 6, %v1359
    %v1361 = vrot.slane %v449, %v1360
    %1363 = vbcast.lane.b32.xlu0 %v1361, 256
    %v1364 = vpop.permute.xlu0 %1363
    %v1365 = vlaneseq
    %v1366 = vshrl.u32 %v1365, 7
    %v1367 = vsub.s32 7, %v1366
    %v1368 = vrot.slane %v449, %v1367
    %1370 = vbcast.lane.b32.xlu0 %v1368, 256
    %v1371 = vpop.permute.xlu0 %1370
    %v1372 = vlaneseq
    %v1373 = vshrl.u32 %v1372, 7
    %v1374 = vsub.s32 0, %v1373
    %v1375 = vrot.slane %v1241, %v1374
    %v1376 = vlaneseq
    %v1377 = vshrl.u32 %v1376, 7
    %v1378 = vsub.s32 0, %v1377
    %v1379 = vrot.slane %v1255, %v1378
    %v1380 = vlaneseq
    %v1381 = vshrl.u32 %v1380, 7
    %v1382 = vsub.s32 0, %v1381
    %v1383 = vrot.slane %v1263, %v1382
    %v1384 = vlaneseq
    %v1385 = vshrl.u32 %v1384, 7
    %v1386 = vsub.s32 0, %v1385
    %v1387 = vrot.slane %v1265, %v1386
    %v1388 = vlaneseq
    %v1389 = vshrl.u32 %v1388, 7
    %v1390 = vsub.s32 0, %v1389
    %v1391 = vrot.slane %v1248, %v1390
    %v1392 = vlaneseq
    %v1393 = vshrl.u32 %v1392, 7
    %v1394 = vsub.s32 0, %v1393
    %v1395 = vrot.slane %v1262, %v1394
    %v1396 = vlaneseq
    %v1397 = vshrl.u32 %v1396, 7
    %v1398 = vsub.s32 0, %v1397
    %v1399 = vrot.slane %v1264, %v1398
    %v1400 = vlaneseq
    %v1401 = vshrl.u32 %v1400, 7
    %v1402 = vsub.s32 0, %v1401
    %v1403 = vrot.slane %v1266, %v1402
    %v1404 = vlaneseq
    %v1405 = vshrl.u32 %v1404, 7
    %v1406 = vsub.s32 0, %v1405
    %v1407 = vrot.slane %v1290, %v1406
    %v1408 = vlaneseq
    %v1409 = vshrl.u32 %v1408, 7
    %v1410 = vsub.s32 0, %v1409
    %v1411 = vrot.slane %v1304, %v1410
    %v1412 = vlaneseq
    %v1413 = vshrl.u32 %v1412, 7
    %v1414 = vsub.s32 0, %v1413
    %v1415 = vrot.slane %v1312, %v1414
    %v1416 = vlaneseq
    %v1417 = vshrl.u32 %v1416, 7
    %v1418 = vsub.s32 0, %v1417
    %v1419 = vrot.slane %v1314, %v1418
    %v1420 = vlaneseq
    %v1421 = vshrl.u32 %v1420, 7
    %v1422 = vsub.s32 0, %v1421
    %v1423 = vrot.slane %v1297, %v1422
    %v1424 = vlaneseq
    %v1425 = vshrl.u32 %v1424, 7
    %v1426 = vsub.s32 0, %v1425
    %v1427 = vrot.slane %v1311, %v1426
    %v1428 = vlaneseq
    %v1429 = vshrl.u32 %v1428, 7
    %v1430 = vsub.s32 0, %v1429
    %v1431 = vrot.slane %v1313, %v1430
    %v1432 = vlaneseq
    %v1433 = vshrl.u32 %v1432, 7
    %v1434 = vsub.s32 0, %v1433
    %v1435 = vrot.slane %v1315, %v1434
    %v1452 = vmul.f32 %v1375, %v1322
    %v1453 = vmul.f32 %v1379, %v1329
    %v1454 = vmul.f32 %v1383, %v1336
    %v1455 = vmul.f32 %v1387, %v1343
    %v1456 = vmul.f32 %v1391, %v1350
    %v1457 = vmul.f32 %v1395, %v1357
    %v1458 = vmul.f32 %v1399, %v1364
    %v1459 = vmul.f32 %v1403, %v1371
    %v1460 = vmul.f32 %v1407, %v1322
    %v1461 = vmul.f32 %v1411, %v1329
    %v1462 = vmul.f32 %v1415, %v1336
    %v1463 = vmul.f32 %v1419, %v1343
    %v1464 = vmul.f32 %v1423, %v1350
    %v1465 = vmul.f32 %v1427, %v1357
    %v1466 = vmul.f32 %v1431, %v1364
    %v1467 = vmul.f32 %v1435, %v1371
    %v1468 = vsel %vm723, %v1452, 0.0
    %v1469 = vsel %vm723, %v1453, 0.0
    %v1470 = vadd.f32 %v1468, %v1469
    %v1471 = vsel %vm723, %v1454, 0.0
    %v1472 = vadd.f32 %v1470, %v1471
    %v1473 = vsel %vm723, %v1455, 0.0
    %v1474 = vadd.f32 %v1472, %v1473
    %v1475 = vsel %vm723, %v1456, 0.0
    %v1476 = vadd.f32 %v1474, %v1475
    %v1477 = vsel %vm723, %v1457, 0.0
    %v1478 = vadd.f32 %v1476, %v1477
    %v1479 = vsel %vm723, %v1458, 0.0
    %v1480 = vadd.f32 %v1478, %v1479
    %v1481 = vsel %vm723, %v1459, 0.0
    %v1482 = vadd.f32 %v1480, %v1481
    %v1483 = vsel %vm723, %v1460, 0.0
    %v1484 = vsel %vm723, %v1461, 0.0
    %v1485 = vadd.f32 %v1483, %v1484
    %v1486 = vsel %vm723, %v1462, 0.0
    %v1487 = vadd.f32 %v1485, %v1486
    %v1488 = vsel %vm723, %v1463, 0.0
    %v1489 = vadd.f32 %v1487, %v1488
    %v1490 = vsel %vm723, %v1464, 0.0
    %v1491 = vadd.f32 %v1489, %v1490
    %v1492 = vsel %vm723, %v1465, 0.0
    %v1493 = vadd.f32 %v1491, %v1492
    %v1494 = vsel %vm723, %v1466, 0.0
    %v1495 = vadd.f32 %v1493, %v1494
    %v1496 = vsel %vm723, %v1467, 0.0
    %v1497 = vadd.f32 %v1495, %v1496
    %1499 = vset.pattern.permute.xlu0 0
    %1500 = vperm.xlu0 %1499, %v453
    %v1501 = vpop.permute.xlu0 %1500
    %v1503 = vadd.f32 %v1482, %v1501
    %v1504 = vadd.f32 %v1497, %v1501
    %v1507 = vrot.slane %v1503, 6
    %v1508 = vrot.slane %v1504, 6
    %v1511 = vmul.f32 %v1503, %v1507
    %v1512 = vmul.f32 %v1504, %v1508
    %v1515 = vrot.slane %v1512, 7
    %v1516 = vsel %vm772, %v1515, %v1511
    %v1518 = vsel %vm775, %v1516, 0.0
    %1519 = vadd.xlane.f32.xlu0 %v1518
    %v1520 = vpop.xlane.xlu0 %1519
    %v1521 = vmul.f32 %v1520, 0.03125
    %v1523 = vrot.slane %v1521, 1
    %v1524 = vrot.slane %v1521, 2
    %v1527 = vmul.f32 %v1503, %v1523
    %v1528 = vmul.f32 %v1504, %v1524
    %v1529 = vlaneseq
    %v1530 = vshrl.u32 %v1529, 7
    %v1531 = vsub.s32 1, %v1530
    %v1532 = vrot.slane %v1527, %v1531
    %v1533 = vlaneseq
    %v1534 = vshrl.u32 %v1533, 7
    %v1535 = vsub.s32 1, %v1534
    %v1536 = vrot.slane %v1528, %v1535
    %1538 = vset.pattern.permute.xlu0 0
    %1539 = vperm.xlu0 %1538, %v457
    %v1540 = vpop.permute.xlu0 %1539
    %v1542 = vmul.f32 %v1532, %v1540
    %v1543 = vmul.f32 %v1536, %v1540
    %1545 = vset.pattern.permute.xlu0 0
    %1546 = vperm.xlu0 %1545, %v461
    %v1547 = vpop.permute.xlu0 %1546
    %v1549 = vadd.f32 %v1542, %v1547
    %v1550 = vadd.f32 %v1543, %v1547
    %v1551 = vsel %vm305, %v1549, 0.0
    %v1552 = vsel %vm305, %v1550, 0.0
    %v1553 = vadd.f32 %v1551, %v1552
    %1554 = vadd.xlane.f32.xlu0 %v1553
    %v1555 = vpop.xlane.xlu0 %1554
    %v1556 = vmul.f32 %v1555, %v311
    %v1557 = vsub.f32 %v1549, %v1556
    %v1558 = vsub.f32 %v1550, %v1556
    %v1559 = vmul.f32 %v1557, %v1557
    %v1560 = vmul.f32 %v1558, %v1558
    %v1561 = vsel %vm305, %v1559, 0.0
    %v1562 = vsel %vm305, %v1560, 0.0
    %v1563 = vadd.f32 %v1561, %v1562
    %1564 = vadd.xlane.f32.xlu0 %v1563
    %v1565 = vpop.xlane.xlu0 %1564
    %v1566 = vmul.f32 %v1565, %v311
    %v1567 = vadd.f32 %v1566, 1e-05
    %v1568 = vrsqrt.pop %v1567
    %v1569 = vmul.f32 %v1557, %v1568
    %v1570 = vmul.f32 %v1558, %v1568
    %1572 = vset.pattern.permute.xlu0 0
    %1573 = vperm.xlu0 %1572, %v465
    %v1574 = vpop.permute.xlu0 %1573
    %v1576 = vmul.f32 %v1569, %v1574
    %v1577 = vmul.f32 %v1570, %v1574
    %1579 = vset.pattern.permute.xlu0 0
    %1580 = vperm.xlu0 %1579, %v469
    %v1581 = vpop.permute.xlu0 %1580
    %v1583 = vadd.f32 %v1576, %v1581
    %v1584 = vadd.f32 %v1577, %v1581
    %v1585 = vadd.f32 %v1583, %v1214
    %v1586 = vadd.f32 %v1584, %v1215
    %v1589 = vcombine.high %v1585, %v1585
    %v1591 = vunpack.c.l.s4 1966171168
    %v1592 = vunpack.c.0.s8 %v1591
    %v1593 = vlaneseq
    %v1594 = vshrl.u32 %v1593, 7
    %v1595 = vsub.s32 %v1592, %v1594
    %v1596 = vrot.slane %v1585, %v1595
    %v1598 = vunpack.c.l.s4 1966171168
    %v1599 = vunpack.c.0.s8 %v1598
    %v1600 = vlaneseq
    %v1601 = vshrl.u32 %v1600, 7
    %v1602 = vsub.s32 %v1599, %v1601
    %v1603 = vrot.slane %v1589, %v1602
    %v1604 = vcombine.high %v1596, %v1596
    %v1605 = vcombine.high %v1603, %v1603
    %v1607 = vunpack.c.l.s4 1966171168
    %v1608 = vunpack.c.0.s8 %v1607
    %v1609 = vlaneseq
    %v1610 = vshrl.u32 %v1609, 7
    %v1611 = vsub.s32 %v1608, %v1610
    %v1612 = vrot.slane %v1596, %v1611
    %v1614 = vunpack.c.l.s4 1966171168
    %v1615 = vunpack.c.0.s8 %v1614
    %v1616 = vlaneseq
    %v1617 = vshrl.u32 %v1616, 7
    %v1618 = vsub.s32 %v1615, %v1617
    %v1619 = vrot.slane %v1603, %v1618
    %v1621 = vunpack.c.l.s4 1966171168
    %v1622 = vunpack.c.0.s8 %v1621
    %v1623 = vlaneseq
    %v1624 = vshrl.u32 %v1623, 7
    %v1625 = vsub.s32 %v1622, %v1624
    %v1626 = vrot.slane %v1604, %v1625
    %v1628 = vunpack.c.l.s4 1966171168
    %v1629 = vunpack.c.0.s8 %v1628
    %v1630 = vlaneseq
    %v1631 = vshrl.u32 %v1630, 7
    %v1632 = vsub.s32 %v1629, %v1631
    %v1633 = vrot.slane %v1605, %v1632
    %v1634 = vcombine.high %v1612, %v1612
    %v1635 = vcombine.high %v1619, %v1619
    %v1636 = vcombine.high %v1626, %v1626
    %v1637 = vcombine.high %v1633, %v1633
    %v1638 = vcombine.high %v1586, %v1586
    %v1640 = vunpack.c.l.s4 1966171168
    %v1641 = vunpack.c.0.s8 %v1640
    %v1642 = vlaneseq
    %v1643 = vshrl.u32 %v1642, 7
    %v1644 = vsub.s32 %v1641, %v1643
    %v1645 = vrot.slane %v1586, %v1644
    %v1647 = vunpack.c.l.s4 1966171168
    %v1648 = vunpack.c.0.s8 %v1647
    %v1649 = vlaneseq
    %v1650 = vshrl.u32 %v1649, 7
    %v1651 = vsub.s32 %v1648, %v1650
    %v1652 = vrot.slane %v1638, %v1651
    %v1653 = vcombine.high %v1645, %v1645
    %v1654 = vcombine.high %v1652, %v1652
    %v1656 = vunpack.c.l.s4 1966171168
    %v1657 = vunpack.c.0.s8 %v1656
    %v1658 = vlaneseq
    %v1659 = vshrl.u32 %v1658, 7
    %v1660 = vsub.s32 %v1657, %v1659
    %v1661 = vrot.slane %v1645, %v1660
    %v1663 = vunpack.c.l.s4 1966171168
    %v1664 = vunpack.c.0.s8 %v1663
    %v1665 = vlaneseq
    %v1666 = vshrl.u32 %v1665, 7
    %v1667 = vsub.s32 %v1664, %v1666
    %v1668 = vrot.slane %v1652, %v1667
    %v1670 = vunpack.c.l.s4 1966171168
    %v1671 = vunpack.c.0.s8 %v1670
    %v1672 = vlaneseq
    %v1673 = vshrl.u32 %v1672, 7
    %v1674 = vsub.s32 %v1671, %v1673
    %v1675 = vrot.slane %v1653, %v1674
    %v1677 = vunpack.c.l.s4 1966171168
    %v1678 = vunpack.c.0.s8 %v1677
    %v1679 = vlaneseq
    %v1680 = vshrl.u32 %v1679, 7
    %v1681 = vsub.s32 %v1678, %v1680
    %v1682 = vrot.slane %v1654, %v1681
    %v1683 = vcombine.high %v1661, %v1661
    %v1684 = vcombine.high %v1668, %v1668
    %v1685 = vcombine.high %v1675, %v1675
    %v1686 = vcombine.high %v1682, %v1682
    %v1687 = vlaneseq
    %v1688 = vshrl.u32 %v1687, 7
    %v1689 = vsub.s32 0, %v1688
    %v1690 = vrot.slane %v450, %v1689
    %1692 = vbcast.lane.b32.xlu0 %v1690, 256
    %v1693 = vpop.permute.xlu0 %1692
    %v1694 = vlaneseq
    %v1695 = vshrl.u32 %v1694, 7
    %v1696 = vsub.s32 1, %v1695
    %v1697 = vrot.slane %v450, %v1696
    %1699 = vbcast.lane.b32.xlu0 %v1697, 256
    %v1700 = vpop.permute.xlu0 %1699
    %v1701 = vlaneseq
    %v1702 = vshrl.u32 %v1701, 7
    %v1703 = vsub.s32 2, %v1702
    %v1704 = vrot.slane %v450, %v1703
    %1706 = vbcast.lane.b32.xlu0 %v1704, 256
    %v1707 = vpop.permute.xlu0 %1706
    %v1708 = vlaneseq
    %v1709 = vshrl.u32 %v1708, 7
    %v1710 = vsub.s32 3, %v1709
    %v1711 = vrot.slane %v450, %v1710
    %1713 = vbcast.lane.b32.xlu0 %v1711, 256
    %v1714 = vpop.permute.xlu0 %1713
    %v1715 = vlaneseq
    %v1716 = vshrl.u32 %v1715, 7
    %v1717 = vsub.s32 4, %v1716
    %v1718 = vrot.slane %v450, %v1717
    %1720 = vbcast.lane.b32.xlu0 %v1718, 256
    %v1721 = vpop.permute.xlu0 %1720
    %v1722 = vlaneseq
    %v1723 = vshrl.u32 %v1722, 7
    %v1724 = vsub.s32 5, %v1723
    %v1725 = vrot.slane %v450, %v1724
    %1727 = vbcast.lane.b32.xlu0 %v1725, 256
    %v1728 = vpop.permute.xlu0 %1727
    %v1729 = vlaneseq
    %v1730 = vshrl.u32 %v1729, 7
    %v1731 = vsub.s32 6, %v1730
    %v1732 = vrot.slane %v450, %v1731
    %1734 = vbcast.lane.b32.xlu0 %v1732, 256
    %v1735 = vpop.permute.xlu0 %1734
    %v1736 = vlaneseq
    %v1737 = vshrl.u32 %v1736, 7
    %v1738 = vsub.s32 7, %v1737
    %v1739 = vrot.slane %v450, %v1738
    %1741 = vbcast.lane.b32.xlu0 %v1739, 256
    %v1742 = vpop.permute.xlu0 %1741
    %v1743 = vlaneseq
    %v1744 = vshrl.u32 %v1743, 7
    %v1745 = vsub.s32 0, %v1744
    %v1746 = vrot.slane %v1612, %v1745
    %v1747 = vlaneseq
    %v1748 = vshrl.u32 %v1747, 7
    %v1749 = vsub.s32 0, %v1748
    %v1750 = vrot.slane %v1626, %v1749
    %v1751 = vlaneseq
    %v1752 = vshrl.u32 %v1751, 7
    %v1753 = vsub.s32 0, %v1752
    %v1754 = vrot.slane %v1634, %v1753
    %v1755 = vlaneseq
    %v1756 = vshrl.u32 %v1755, 7
    %v1757 = vsub.s32 0, %v1756
    %v1758 = vrot.slane %v1636, %v1757
    %v1759 = vlaneseq
    %v1760 = vshrl.u32 %v1759, 7
    %v1761 = vsub.s32 0, %v1760
    %v1762 = vrot.slane %v1619, %v1761
    %v1763 = vlaneseq
    %v1764 = vshrl.u32 %v1763, 7
    %v1765 = vsub.s32 0, %v1764
    %v1766 = vrot.slane %v1633, %v1765
    %v1767 = vlaneseq
    %v1768 = vshrl.u32 %v1767, 7
    %v1769 = vsub.s32 0, %v1768
    %v1770 = vrot.slane %v1635, %v1769
    %v1771 = vlaneseq
    %v1772 = vshrl.u32 %v1771, 7
    %v1773 = vsub.s32 0, %v1772
    %v1774 = vrot.slane %v1637, %v1773
    %v1775 = vlaneseq
    %v1776 = vshrl.u32 %v1775, 7
    %v1777 = vsub.s32 0, %v1776
    %v1778 = vrot.slane %v1661, %v1777
    %v1779 = vlaneseq
    %v1780 = vshrl.u32 %v1779, 7
    %v1781 = vsub.s32 0, %v1780
    %v1782 = vrot.slane %v1675, %v1781
    %v1783 = vlaneseq
    %v1784 = vshrl.u32 %v1783, 7
    %v1785 = vsub.s32 0, %v1784
    %v1786 = vrot.slane %v1683, %v1785
    %v1787 = vlaneseq
    %v1788 = vshrl.u32 %v1787, 7
    %v1789 = vsub.s32 0, %v1788
    %v1790 = vrot.slane %v1685, %v1789
    %v1791 = vlaneseq
    %v1792 = vshrl.u32 %v1791, 7
    %v1793 = vsub.s32 0, %v1792
    %v1794 = vrot.slane %v1668, %v1793
    %v1795 = vlaneseq
    %v1796 = vshrl.u32 %v1795, 7
    %v1797 = vsub.s32 0, %v1796
    %v1798 = vrot.slane %v1682, %v1797
    %v1799 = vlaneseq
    %v1800 = vshrl.u32 %v1799, 7
    %v1801 = vsub.s32 0, %v1800
    %v1802 = vrot.slane %v1684, %v1801
    %v1803 = vlaneseq
    %v1804 = vshrl.u32 %v1803, 7
    %v1805 = vsub.s32 0, %v1804
    %v1806 = vrot.slane %v1686, %v1805
    %v1823 = vmul.f32 %v1746, %v1693
    %v1824 = vmul.f32 %v1750, %v1700
    %v1825 = vmul.f32 %v1754, %v1707
    %v1826 = vmul.f32 %v1758, %v1714
    %v1827 = vmul.f32 %v1762, %v1721
    %v1828 = vmul.f32 %v1766, %v1728
    %v1829 = vmul.f32 %v1770, %v1735
    %v1830 = vmul.f32 %v1774, %v1742
    %v1831 = vmul.f32 %v1778, %v1693
    %v1832 = vmul.f32 %v1782, %v1700
    %v1833 = vmul.f32 %v1786, %v1707
    %v1834 = vmul.f32 %v1790, %v1714
    %v1835 = vmul.f32 %v1794, %v1721
    %v1836 = vmul.f32 %v1798, %v1728
    %v1837 = vmul.f32 %v1802, %v1735
    %v1838 = vmul.f32 %v1806, %v1742
    %v1839 = vsel %vm723, %v1823, 0.0
    %v1840 = vsel %vm723, %v1824, 0.0
    %v1841 = vadd.f32 %v1839, %v1840
    %v1842 = vsel %vm723, %v1825, 0.0
    %v1843 = vadd.f32 %v1841, %v1842
    %v1844 = vsel %vm723, %v1826, 0.0
    %v1845 = vadd.f32 %v1843, %v1844
    %v1846 = vsel %vm723, %v1827, 0.0
    %v1847 = vadd.f32 %v1845, %v1846
    %v1848 = vsel %vm723, %v1828, 0.0
    %v1849 = vadd.f32 %v1847, %v1848
    %v1850 = vsel %vm723, %v1829, 0.0
    %v1851 = vadd.f32 %v1849, %v1850
    %v1852 = vsel %vm723, %v1830, 0.0
    %v1853 = vadd.f32 %v1851, %v1852
    %v1854 = vsel %vm723, %v1831, 0.0
    %v1855 = vsel %vm723, %v1832, 0.0
    %v1856 = vadd.f32 %v1854, %v1855
    %v1857 = vsel %vm723, %v1833, 0.0
    %v1858 = vadd.f32 %v1856, %v1857
    %v1859 = vsel %vm723, %v1834, 0.0
    %v1860 = vadd.f32 %v1858, %v1859
    %v1861 = vsel %vm723, %v1835, 0.0
    %v1862 = vadd.f32 %v1860, %v1861
    %v1863 = vsel %vm723, %v1836, 0.0
    %v1864 = vadd.f32 %v1862, %v1863
    %v1865 = vsel %vm723, %v1837, 0.0
    %v1866 = vadd.f32 %v1864, %v1865
    %v1867 = vsel %vm723, %v1838, 0.0
    %v1868 = vadd.f32 %v1866, %v1867
    %1870 = vset.pattern.permute.xlu0 0
    %1871 = vperm.xlu0 %1870, %v454
    %v1872 = vpop.permute.xlu0 %1871
    %v1874 = vadd.f32 %v1853, %v1872
    %v1875 = vadd.f32 %v1868, %v1872
    %v1878 = vrot.slane %v1874, 6
    %v1879 = vrot.slane %v1875, 6
    %v1882 = vmul.f32 %v1874, %v1878
    %v1883 = vmul.f32 %v1875, %v1879
    %v1886 = vrot.slane %v1883, 7
    %v1887 = vsel %vm772, %v1886, %v1882
    %v1889 = vsel %vm775, %v1887, 0.0
    %1890 = vadd.xlane.f32.xlu0 %v1889
    %v1891 = vpop.xlane.xlu0 %1890
    %v1892 = vmul.f32 %v1891, 0.03125
    %v1894 = vrot.slane %v1892, 1
    %v1895 = vrot.slane %v1892, 2
    %v1898 = vmul.f32 %v1874, %v1894
    %v1899 = vmul.f32 %v1875, %v1895
    %v1900 = vlaneseq
    %v1901 = vshrl.u32 %v1900, 7
    %v1902 = vsub.s32 1, %v1901
    %v1903 = vrot.slane %v1898, %v1902
    %v1904 = vlaneseq
    %v1905 = vshrl.u32 %v1904, 7
    %v1906 = vsub.s32 1, %v1905
    %v1907 = vrot.slane %v1899, %v1906
    %1909 = vset.pattern.permute.xlu0 0
    %1910 = vperm.xlu0 %1909, %v458
    %v1911 = vpop.permute.xlu0 %1910
    %v1913 = vmul.f32 %v1903, %v1911
    %v1914 = vmul.f32 %v1907, %v1911
    %1916 = vset.pattern.permute.xlu0 0
    %1917 = vperm.xlu0 %1916, %v462
    %v1918 = vpop.permute.xlu0 %1917
    %v1920 = vadd.f32 %v1913, %v1918
    %v1921 = vadd.f32 %v1914, %v1918
    %v1922 = vsel %vm305, %v1920, 0.0
    %v1923 = vsel %vm305, %v1921, 0.0
    %v1924 = vadd.f32 %v1922, %v1923
    %1925 = vadd.xlane.f32.xlu0 %v1924
    %v1926 = vpop.xlane.xlu0 %1925
    %v1927 = vmul.f32 %v1926, %v311
    %v1928 = vsub.f32 %v1920, %v1927
    %v1929 = vsub.f32 %v1921, %v1927
    %v1930 = vmul.f32 %v1928, %v1928
    %v1931 = vmul.f32 %v1929, %v1929
    %v1932 = vsel %vm305, %v1930, 0.0
    %v1933 = vsel %vm305, %v1931, 0.0
    %v1934 = vadd.f32 %v1932, %v1933
    %1935 = vadd.xlane.f32.xlu0 %v1934
    %v1936 = vpop.xlane.xlu0 %1935
    %v1937 = vmul.f32 %v1936, %v311
    %v1938 = vadd.f32 %v1937, 1e-05
    %v1939 = vrsqrt.pop %v1938
    %v1940 = vmul.f32 %v1928, %v1939
    %v1941 = vmul.f32 %v1929, %v1939
    %1943 = vset.pattern.permute.xlu0 0
    %1944 = vperm.xlu0 %1943, %v466
    %v1945 = vpop.permute.xlu0 %1944
    %v1947 = vmul.f32 %v1940, %v1945
    %v1948 = vmul.f32 %v1941, %v1945
    %1950 = vset.pattern.permute.xlu0 0
    %1951 = vperm.xlu0 %1950, %v470
    %v1952 = vpop.permute.xlu0 %1951
    %v1954 = vadd.f32 %v1947, %v1952
    %v1955 = vadd.f32 %v1948, %v1952
    %v1956 = vadd.f32 %v1954, %v1585
    %v1957 = vadd.f32 %v1955, %v1586
    %v1958 = vld [vmem:[%s17] sm:$0xff]
    %v1959 = vld [vmem:[%s17 + $0x8] sm:$0xff]
    %v1960 = vld [vmem:[%s17 + $0x10] sm:$0xff]
    %v1961 = vld [vmem:[%s17 + $0x18] sm:$0xff]
    %v1962 = vld [vmem:[%s18] sm:$0x1]
    %v1964 = vlaneseq
    %v1965 = vshrl.u32 %v1964, 7
    %v1966 = vsub.s32 0, %v1965
    %v1967 = vrot.slane %v1962, %v1966
    %v1970 = vsel %vm305, %v1956, 0
    %v1973 = vsel %vm305, %v1957, 0
    %1975 = vmatprep.subr.mxu0 0.0
    %1976 = vmatpush1.msra.mxu0 0.0
    %1977 = vmatprep.subr.mxu0 0.0
    %1978 = vmatpush1.msra.mxu0 0.0
    %1979 = vmatprep.subr.mxu0 0.0
    %1980 = vmatpush1.msra.mxu0 0.0
    %1981 = vmatprep.subr.mxu0 0.0
    %1982 = vmatpush1.msra.mxu0 0.0
    %1983 = vmatprep.subr.mxu0 0.0
    %1984 = vmatpush1.msra.mxu0 0.0
    %1985 = vmatprep.subr.mxu0 0.0
    %1986 = vmatpush1.msra.mxu0 0.0
    %1987 = vmatprep.subr.mxu0 0.0
    %1988 = vmatpush1.msra.mxu0 0.0
    %1989 = vmatprep.subr.mxu0 0.0
    %1990 = vmatpush1.msra.mxu0 0.0
    %1991 = vmatprep.subr.mxu0 0.0
    %1992 = vmatpush1.msra.mxu0 0.0
    %1993 = vmatprep.subr.mxu0 0.0
    %1994 = vmatpush1.msra.mxu0 0.0
    %1995 = vmatprep.subr.mxu0 0.0
    %1996 = vmatpush1.msra.mxu0 0.0
    %1997 = vmatprep.subr.mxu0 0.0
    %1998 = vmatpush1.msra.mxu0 0.0
    %1999 = vmatprep.subr.mxu0 0.0
    %2000 = vmatpush1.msra.mxu0 %v1961
    %2001 = vmatprep.subr.mxu0 0.0
    %2002 = vmatpush1.msra.mxu0 %v1960
    %2003 = vmatprep.subr.mxu0 0.0
    %2004 = vmatpush1.msra.mxu0 %v1959
    %2005 = vmatprep.subr.mxu0 0.0
    %2006 = vmatpush1.msra.mxu0 %v1958
    %2007 = vmatprep.subr.mxu0 0.0
    %2008 = vmatpush2.msra.mxu0 0.0
    %2009 = vmatprep.subr.mxu0 0.0
    %2010 = vmatpush2.msra.mxu0 0.0
    %2011 = vmatprep.subr.mxu0 0.0
    %2012 = vmatpush2.msra.mxu0 0.0
    %2013 = vmatprep.subr.mxu0 0.0
    %2014 = vmatpush2.msra.mxu0 0.0
    %2015 = vmatprep.subr.mxu0 0.0
    %2016 = vmatpush2.msra.mxu0 0.0
    %2017 = vmatprep.subr.mxu0 0.0
    %2018 = vmatpush2.msra.mxu0 0.0
    %2019 = vmatprep.subr.mxu0 0.0
    %2020 = vmatpush2.msra.mxu0 0.0
    %2021 = vmatprep.subr.mxu0 0.0
    %2022 = vmatpush2.msra.mxu0 0.0
    %2023 = vmatprep.subr.mxu0 0.0
    %2024 = vmatpush2.msra.mxu0 0.0
    %2025 = vmatprep.subr.mxu0 0.0
    %2026 = vmatpush2.msra.mxu0 0.0
    %2027 = vmatprep.subr.mxu0 0.0
    %2028 = vmatpush2.msra.mxu0 0.0
    %2029 = vmatprep.subr.mxu0 0.0
    %2030 = vmatpush2.msra.mxu0 0.0
    %2031 = vmatprep.subr.mxu0 0.0
    %2032 = vmatpush2.msra.mxu0 0.0
    %2033 = vmatprep.subr.mxu0 0.0
    %2034 = vmatpush2.msra.mxu0 0.0
    %2035 = vmatprep.subr.mxu0 0.0
    %2036 = vmatpush2.msra.mxu0 0.0
    %2037 = vmatprep.subr.mxu0 0.0
    %2038 = vmatpush2.msra.mxu0 0.0
    %2039 = vmatprep.mubr.f32.mxu0 0.0
    %2040 = vmatmul.mubr.f32.gmra.mxu0 %v1970
    %v2041 = vpop.f32.mrf.mxu0
    %v2042 = vadd.f32 %v1967, %v2041
    %v2043 = vpop.f32.mrf.mxu0
    %2044 = vmatprep.mubr.f32.mxu0 0.0
    %2045 = vmatmul.mubr.f32.gmra.mxu0 %v1973
    %v2046 = vpop.f32.mrf.mxu0
    %v2047 = vadd.f32 %v1967, %v2046
    %v2048 = vpop.f32.mrf.mxu0
    %2049 = vdwg.mxu0
    %v2050 = vld [vmem:[%s19] sm:$0xff]
    %v2051 = vld [vmem:[%s20] sm:$0xff]
    %v2052 = vsel %vm175, %v2042, 0.0
    %v2053 = vsel %vm175, %v2047, 0.0
    %v2054 = vadd.f32 %v2052, %v2053
    %2055 = vadd.xlane.f32.xlu0 %v2054
    %v2056 = vpop.xlane.xlu0 %2055
    %v2057 = vmul.f32 %v2056, %v181
    %v2058 = vsub.f32 %v2042, %v2057
    %v2059 = vsub.f32 %v2047, %v2057
    %v2060 = vmul.f32 %v2058, %v2058
    %v2061 = vmul.f32 %v2059, %v2059
    %v2062 = vsel %vm175, %v2060, 0.0
    %v2063 = vsel %vm175, %v2061, 0.0
    %v2064 = vadd.f32 %v2062, %v2063
    %2065 = vadd.xlane.f32.xlu0 %v2064
    %v2066 = vpop.xlane.xlu0 %2065
    %v2067 = vmul.f32 %v2066, %v181
    %v2068 = vadd.f32 %v2067, 1e-05
    %v2069 = vrsqrt.pop %v2068
    %v2070 = vmul.f32 %v2058, %v2069
    %v2071 = vmul.f32 %v2059, %v2069
    %2073 = vset.pattern.permute.xlu0 0
    %2074 = vperm.xlu0 %2073, %v2050
    %v2075 = vpop.permute.xlu0 %2074
    %v2077 = vmul.f32 %v2070, %v2075
    %v2078 = vmul.f32 %v2071, %v2075
    %2080 = vset.pattern.permute.xlu0 0
    %2081 = vperm.xlu0 %2080, %v2051
    %v2082 = vpop.permute.xlu0 %2081
    %v2084 = vadd.f32 %v2077, %v2082
    %v2085 = vadd.f32 %v2078, %v2082
    %v2086 = vmax.f32 %v2084, 0.0
    %v2087 = vmax.f32 %v2085, 0.0
    %v2088 = vld [vmem:[%s21] sm:$0xff]
    %v2089 = vld [vmem:[%s21 + $0x8] sm:$0xff]
    %v2090 = vld [vmem:[%s22] sm:$0x1]
    %v2092 = vlaneseq
    %v2093 = vshrl.u32 %v2092, 7
    %v2094 = vsub.s32 0, %v2093
    %v2095 = vrot.slane %v2090, %v2094
    %v2098 = vsel %vm175, %v2086, 0
    %v2101 = vsel %vm175, %v2087, 0
    %2103 = vmatprep.subr.mxu0 0.0
    %2104 = vmatpush1.msra.mxu0 0.0
    %2105 = vmatprep.subr.mxu0 0.0
    %2106 = vmatpush1.msra.mxu0 0.0
    %2107 = vmatprep.subr.mxu0 0.0
    %2108 = vmatpush1.msra.mxu0 0.0
    %2109 = vmatprep.subr.mxu0 0.0
    %2110 = vmatpush1.msra.mxu0 0.0
    %2111 = vmatprep.subr.mxu0 0.0
    %2112 = vmatpush1.msra.mxu0 0.0
    %2113 = vmatprep.subr.mxu0 0.0
    %2114 = vmatpush1.msra.mxu0 0.0
    %2115 = vmatprep.subr.mxu0 0.0
    %2116 = vmatpush1.msra.mxu0 0.0
    %2117 = vmatprep.subr.mxu0 0.0
    %2118 = vmatpush1.msra.mxu0 0.0
    %2119 = vmatprep.subr.mxu0 0.0
    %2120 = vmatpush1.msra.mxu0 0.0
    %2121 = vmatprep.subr.mxu0 0.0
    %2122 = vmatpush1.msra.mxu0 0.0
    %2123 = vmatprep.subr.mxu0 0.0
    %2124 = vmatpush1.msra.mxu0 0.0
    %2125 = vmatprep.subr.mxu0 0.0
    %2126 = vmatpush1.msra.mxu0 0.0
    %2127 = vmatprep.subr.mxu0 0.0
    %2128 = vmatpush1.msra.mxu0 0.0
    %2129 = vmatprep.subr.mxu0 0.0
    %2130 = vmatpush1.msra.mxu0 0.0
    %2131 = vmatprep.subr.mxu0 0.0
    %2132 = vmatpush1.msra.mxu0 %v2089
    %2133 = vmatprep.subr.mxu0 0.0
    %2134 = vmatpush1.msra.mxu0 %v2088
    %2135 = vmatprep.subr.mxu0 0.0
    %2136 = vmatpush2.msra.mxu0 0.0
    %2137 = vmatprep.subr.mxu0 0.0
    %2138 = vmatpush2.msra.mxu0 0.0
    %2139 = vmatprep.subr.mxu0 0.0
    %2140 = vmatpush2.msra.mxu0 0.0
    %2141 = vmatprep.subr.mxu0 0.0
    %2142 = vmatpush2.msra.mxu0 0.0
    %2143 = vmatprep.subr.mxu0 0.0
    %2144 = vmatpush2.msra.mxu0 0.0
    %2145 = vmatprep.subr.mxu0 0.0
    %2146 = vmatpush2.msra.mxu0 0.0
    %2147 = vmatprep.subr.mxu0 0.0
    %2148 = vmatpush2.msra.mxu0 0.0
    %2149 = vmatprep.subr.mxu0 0.0
    %2150 = vmatpush2.msra.mxu0 0.0
    %2151 = vmatprep.subr.mxu0 0.0
    %2152 = vmatpush2.msra.mxu0 0.0
    %2153 = vmatprep.subr.mxu0 0.0
    %2154 = vmatpush2.msra.mxu0 0.0
    %2155 = vmatprep.subr.mxu0 0.0
    %2156 = vmatpush2.msra.mxu0 0.0
    %2157 = vmatprep.subr.mxu0 0.0
    %2158 = vmatpush2.msra.mxu0 0.0
    %2159 = vmatprep.subr.mxu0 0.0
    %2160 = vmatpush2.msra.mxu0 0.0
    %2161 = vmatprep.subr.mxu0 0.0
    %2162 = vmatpush2.msra.mxu0 0.0
    %2163 = vmatprep.subr.mxu0 0.0
    %2164 = vmatpush2.msra.mxu0 0.0
    %2165 = vmatprep.subr.mxu0 0.0
    %2166 = vmatpush2.msra.mxu0 0.0
    %2167 = vmatprep.mubr.f32.mxu0 0.0
    %2168 = vmatmul.mubr.f32.gmra.mxu0 %v2098
    %v2169 = vpop.f32.mrf.mxu0
    %v2170 = vadd.f32 %v2095, %v2169
    %v2171 = vpop.f32.mrf.mxu0
    %2172 = vmatprep.mubr.f32.mxu0 0.0
    %2173 = vmatmul.mubr.f32.gmra.mxu0 %v2101
    %v2174 = vpop.f32.mrf.mxu0
    %v2175 = vadd.f32 %v2095, %v2174
    %v2176 = vpop.f32.mrf.mxu0
    %2177 = vdwg.mxu0
    %v2178 = vmax.f32 %v2170, 0.0
    %v2179 = vmax.f32 %v2175, 0.0
    %v2180 = vld [vmem:[%s23] sm:$0xff]
    %v2181 = vld [vmem:[%s24] sm:$0x1]
    %v2183 = vlaneseq
    %v2184 = vshrl.u32 %v2183, 7
    %v2185 = vsub.s32 0, %v2184
    %v2186 = vrot.slane %v2181, %v2185
    %v2189 = vsel %vm91, %v2178, 0
    %v2192 = vsel %vm91, %v2179, 0
    %2194 = vmatprep.subr.mxu0 0.0
    %2195 = vmatpush1.msra.mxu0 0.0
    %2196 = vmatprep.subr.mxu0 0.0
    %2197 = vmatpush1.msra.mxu0 0.0
    %2198 = vmatprep.subr.mxu0 0.0
    %2199 = vmatpush1.msra.mxu0 0.0
    %2200 = vmatprep.subr.mxu0 0.0
    %2201 = vmatpush1.msra.mxu0 0.0
    %2202 = vmatprep.subr.mxu0 0.0
    %2203 = vmatpush1.msra.mxu0 0.0
    %2204 = vmatprep.subr.mxu0 0.0
    %2205 = vmatpush1.msra.mxu0 0.0
    %2206 = vmatprep.subr.mxu0 0.0
    %2207 = vmatpush1.msra.mxu0 0.0
    %2208 = vmatprep.subr.mxu0 0.0
    %2209 = vmatpush1.msra.mxu0 0.0
    %2210 = vmatprep.subr.mxu0 0.0
    %2211 = vmatpush1.msra.mxu0 0.0
    %2212 = vmatprep.subr.mxu0 0.0
    %2213 = vmatpush1.msra.mxu0 0.0
    %2214 = vmatprep.subr.mxu0 0.0
    %2215 = vmatpush1.msra.mxu0 0.0
    %2216 = vmatprep.subr.mxu0 0.0
    %2217 = vmatpush1.msra.mxu0 0.0
    %2218 = vmatprep.subr.mxu0 0.0
    %2219 = vmatpush1.msra.mxu0 0.0
    %2220 = vmatprep.subr.mxu0 0.0
    %2221 = vmatpush1.msra.mxu0 0.0
    %2222 = vmatprep.subr.mxu0 0.0
    %2223 = vmatpush1.msra.mxu0 0.0
    %2224 = vmatprep.subr.mxu0 0.0
    %2225 = vmatpush1.msra.mxu0 %v2180
    %2226 = vmatprep.subr.mxu0 0.0
    %2227 = vmatpush2.msra.mxu0 0.0
    %2228 = vmatprep.subr.mxu0 0.0
    %2229 = vmatpush2.msra.mxu0 0.0
    %2230 = vmatprep.subr.mxu0 0.0
    %2231 = vmatpush2.msra.mxu0 0.0
    %2232 = vmatprep.subr.mxu0 0.0
    %2233 = vmatpush2.msra.mxu0 0.0
    %2234 = vmatprep.subr.mxu0 0.0
    %2235 = vmatpush2.msra.mxu0 0.0
    %2236 = vmatprep.subr.mxu0 0.0
    %2237 = vmatpush2.msra.mxu0 0.0
    %2238 = vmatprep.subr.mxu0 0.0
    %2239 = vmatpush2.msra.mxu0 0.0
    %2240 = vmatprep.subr.mxu0 0.0
    %2241 = vmatpush2.msra.mxu0 0.0
    %2242 = vmatprep.subr.mxu0 0.0
    %2243 = vmatpush2.msra.mxu0 0.0
    %2244 = vmatprep.subr.mxu0 0.0
    %2245 = vmatpush2.msra.mxu0 0.0
    %2246 = vmatprep.subr.mxu0 0.0
    %2247 = vmatpush2.msra.mxu0 0.0
    %2248 = vmatprep.subr.mxu0 0.0
    %2249 = vmatpush2.msra.mxu0 0.0
    %2250 = vmatprep.subr.mxu0 0.0
    %2251 = vmatpush2.msra.mxu0 0.0
    %2252 = vmatprep.subr.mxu0 0.0
    %2253 = vmatpush2.msra.mxu0 0.0
    %2254 = vmatprep.subr.mxu0 0.0
    %2255 = vmatpush2.msra.mxu0 0.0
    %2256 = vmatprep.subr.mxu0 0.0
    %2257 = vmatpush2.msra.mxu0 0.0
    %2258 = vmatprep.mubr.f32.mxu0 0.0
    %2259 = vmatmul.mubr.f32.gmra.mxu0 %v2189
    %v2260 = vpop.f32.mrf.mxu0
    %v2261 = vadd.f32 %v2186, %v2260
    %v2262 = vpop.f32.mrf.mxu0
    %2263 = vmatprep.mubr.f32.mxu0 0.0
    %2264 = vmatmul.mubr.f32.gmra.mxu0 %v2192
    %v2265 = vpop.f32.mrf.mxu0
    %v2266 = vadd.f32 %v2186, %v2265
    %v2267 = vpop.f32.mrf.mxu0
    %2268 = vdwg.mxu0
    %v2269 = vxor.u32 %v2261, 2147483648
    %v2270 = vxor.u32 %v2266, 2147483648
    %v2271 = vmul.f32 %v2269, 1.442695
    %v2272 = vpow.pop %v2271
    %v2273 = vmul.f32 %v2270, 1.442695
    %v2274 = vpow.pop %v2273
    %v2275 = vadd.f32 %v2272, 1.0
    %v2276 = vadd.f32 %v2274, 1.0
    %v2277 = vrcp.pop %v2275
    %v2278 = vmul.f32 1.0, %v2277
    %v2279 = vrcp.pop %v2276
    %v2280 = vmul.f32 1.0, %v2279
    %2281 = vst.msk [vmem:[#allocation2] sm:$0xff] %vm91, %v2278
    %2282 = vst.msk [vmem:[#allocation2 + $0x8] sm:$0xff] %vm91, %v2280
    // Predicated region
    $region102: #{generator_forward.1} parent=1 // pred_check
      _
    $region103: #{generator_forward.1} parent=1 // pred_check_branch
      %2284 = sbr.rel (0) target = $region105
    $region104: #{generator_forward.1} parent=1 // pred_region
      %s2286 = ssub.s32 256, 256
      %2287 = vsyncadd [#allocation3], %s2286
      %s2288 = sshll.u32 [#allocation2], 4
      %s2289 = int_to_ptr.vmem [resolvable:$true] %s2288
      %2294 = dma.vmem_to_hbm [thread:$0]  %s2289, 256, %s25, [#allocation3], 128, 128, 8
    $region105: #{generator_forward.1} parent=1 // pred_fallthru
      _
    // Predicated region
    $region106: #{generator_forward.1} parent=1 // pred_check
      _
    $region107: #{generator_forward.1} parent=1 // pred_check_branch
      %2296 = sbr.rel (0) target = $region109
    $region108: #{generator_forward.1} parent=1 // pred_region
      %2297 = dma.done [#allocation3], 256
    $region109: #{generator_forward.1} parent=1 // pred_fallthru
      _
    %2298 = vsyncpa [#allocation3], 1

</llo_original>
